<compile_context>
chip_gen: v6e
topology: v6e:2x2x1
jax: 0.10.0
libtpu: 0.0.40
codegen_flags: <defaults>
</compile_context>

<pallas_src>
import functools

import jax
import jax.numpy as jnp
from jax.experimental import pallas as pl
from jax.experimental.pallas import tpu as pltpu

EPS = 1e-5                      # nn.BatchNorm2d default eps
VMEM_LIMIT = 32 * 1024 * 1024   # safe on v5e/v6e (128 MiB) and v7x (64 MiB)


def _round_up(v, m):
    return (v + m - 1) // m * m


def _conv_stats_kernel(p_ref, w_ref, conv_ref, sum_ref, sq_ref):
    """Pass 1: 3x3 conv as a single folded MXU matmul per M-tile + BN stats.

    p_ref:    (tile_m, K_pad)  bf16  im2col patches (9 taps folded into K)
    w_ref:    (K_pad,  C_pad)  bf16  folded conv weight
    conv_ref: (tile_m, C_pad)  f32   conv output tile (streamed)
    sum_ref:  (1, C_pad)       f32   per-channel running sum    (resident)
    sq_ref:   (1, C_pad)       f32   per-channel running sumsq  (resident)
    """
    conv_ref[...] = jnp.dot(p_ref[...], w_ref[...],
                            preferred_element_type=jnp.float32)

    @pl.when(pl.program_id(0) == 0)
    def _():
        sum_ref[...] = jnp.zeros_like(sum_ref)
        sq_ref[...] = jnp.zeros_like(sq_ref)

    acc = conv_ref[...]
    sum_ref[...] += jnp.sum(acc, axis=0, keepdims=True)
    sq_ref[...] += jnp.sum(acc * acc, axis=0, keepdims=True)


def _norm_relu_kernel(conv_ref, scale_ref, shift_ref, o_ref):
    """Pass 2: folded BatchNorm affine (single FMA) + ReLU."""
    o_ref[...] = jnp.maximum(
        conv_ref[...] * scale_ref[...] + shift_ref[...], 0.0)


@functools.partial(jax.jit, static_argnames=("tile_m",))
def upblock2d_forward(x_nchw, w_hwio, bias, gamma, beta, *, tile_m=512):
    """Pallas-backed UpBlock2d forward.  x_nchw: (N, Cin, H, W) float32."""
    del bias  # per-channel constant before train-mode BN is an exact no-op

    N, Cin, H, W = x_nchw.shape
    Cout = w_hwio.shape[-1]
    H2, W2 = 2 * H, 2 * W
    M = N * H2 * W2
    K = 9 * Cin

    tile_m = max(8, min(tile_m, _round_up(M, 8)))
    M_pad = _round_up(M, tile_m)
    K_pad = _round_up(K, 128)     # lane-dense contraction dim
    C_pad = _round_up(Cout, 128)  # lane-dense output channels
    grid_m = M_pad // tile_m

    # ---- layout glue (XLA): nearest-2x upsample, pad, fold taps into K ----
    x = jnp.transpose(x_nchw, (0, 2, 3, 1))                      # NHWC
    x = jnp.repeat(jnp.repeat(x, 2, axis=1), 2, axis=2)          # nearest 2x
    xp = jnp.pad(x, ((0, 0), (1, 1), (1, 1), (0, 0)))            # conv pad=1
    patches = jnp.concatenate(
        [xp[:, kh:kh + H2, kw:kw + W2, :].reshape(M, Cin)
         for kh in range(3) for kw in range(3)],
        axis=1,
    )                                                            # (M, 9*Cin)
    patches = jnp.pad(patches, ((0, M_pad - M), (0, K_pad - K)))
    patches = patches.astype(jnp.bfloat16)                       # bf16 MXU in

    w = w_hwio.astype(jnp.float32).reshape(K, Cout)              # (9*Cin, Cout)
    w = jnp.pad(w, ((0, K_pad - K), (0, C_pad - Cout))).astype(jnp.bfloat16)

    # ---- pass 1: conv + BN statistics (reduction axis -> "arbitrary") ----
    conv_out, ch_sum, ch_sq = pl.pallas_call(
        _conv_stats_kernel,
        grid=(grid_m,),
        in_specs=[
            pl.BlockSpec((tile_m, K_pad), lambda i: (i, 0)),
            pl.BlockSpec((K_pad, C_pad), lambda i: (0, 0)),
        ],
        out_specs=[
            pl.BlockSpec((tile_m, C_pad), lambda i: (i, 0)),
            pl.BlockSpec((1, C_pad), lambda i: (0, 0)),
            pl.BlockSpec((1, C_pad), lambda i: (0, 0)),
        ],
        out_shape=[
            jax.ShapeDtypeStruct((M_pad, C_pad), jnp.float32),
            jax.ShapeDtypeStruct((1, C_pad), jnp.float32),
            jax.ShapeDtypeStruct((1, C_pad), jnp.float32),
        ],
        compiler_params=pltpu.CompilerParams(
            dimension_semantics=("arbitrary",),
            vmem_limit_bytes=VMEM_LIMIT,
        ),
    )(patches, w)

    # ---- tiny per-channel math: fold BN into a single scale/shift ----
    inv_m = 1.0 / float(M)        # true count (zero-padded rows contribute 0)
    mean = ch_sum * inv_m
    var = jnp.maximum(ch_sq * inv_m - mean * mean, 0.0)
    gamma_p = jnp.pad(gamma.astype(jnp.float32), (0, C_pad - Cout),
                      constant_values=1.0).reshape(1, C_pad)
    beta_p = jnp.pad(beta.astype(jnp.float32),
                     (0, C_pad - Cout)).reshape(1, C_pad)
    scale = gamma_p * jax.lax.rsqrt(var + EPS)
    shift = beta_p - scale * mean

    # ---- pass 2: normalize + ReLU ("parallel" -> megacore sharding) ----
    out_flat = pl.pallas_call(
        _norm_relu_kernel,
        grid=(grid_m,),
        in_specs=[
            pl.BlockSpec((tile_m, C_pad), lambda i: (i, 0)),
            pl.BlockSpec((1, C_pad), lambda i: (0, 0)),
            pl.BlockSpec((1, C_pad), lambda i: (0, 0)),
        ],
        out_specs=pl.BlockSpec((tile_m, C_pad), lambda i: (i, 0)),
        out_shape=jax.ShapeDtypeStruct((M_pad, C_pad), jnp.float32),
        compiler_params=pltpu.CompilerParams(
            dimension_semantics=("parallel",),
            vmem_limit_bytes=VMEM_LIMIT,
        ),
    )(conv_out, scale, shift)

    out = out_flat[:M, :Cout].reshape(N, H2, W2, Cout)
    return jnp.transpose(out, (0, 3, 1, 2))                      # back to NCHW


def upblock2d_reference(x_nchw, w_hwio, bias, gamma, beta):
    """Pure-JAX f32 reference (lax conv) matching PyTorch UpBlock2d.forward."""
    x = jnp.transpose(x_nchw, (0, 2, 3, 1))
    x = jnp.repeat(jnp.repeat(x, 2, axis=1), 2, axis=2)
    y = jax.lax.conv_general_dilated(
        x, w_hwio, window_strides=(1, 1), padding=((1, 1), (1, 1)),
        dimension_numbers=("NHWC", "HWIO", "NHWC"),
    )
    y = y + bias
    mean = jnp.mean(y, axis=(0, 1, 2), keepdims=True)
    var = jnp.mean((y - mean) ** 2, axis=(0, 1, 2), keepdims=True)
    y = (y - mean) * jax.lax.rsqrt(var + EPS) * gamma + beta
    y = jnp.maximum(y, 0.0)
    return jnp.transpose(y, (0, 3, 1, 2))


if __name__ == "__main__":
    # Small shapes consistent with UpBlock2d(in_features=4, out_features=8)
    N, Cin, Cout, H, W = 2, 4, 8, 16, 16

    key = jax.random.PRNGKey(0)
    kx, kw, kb, kg, kbeta = jax.random.split(key, 5)

    x = jax.random.normal(kx, (N, Cin, H, W), dtype=jnp.float32)
    # Conv2d weight (PyTorch layout (Cout, Cin, 3, 3)) stored here as HWIO.
    w_hwio = 0.1 * jax.random.normal(kw, (3, 3, Cin, Cout), dtype=jnp.float32)
    bias = 0.1 * jax.random.normal(kb, (Cout,), dtype=jnp.float32)
    gamma = 1.0 + 0.1 * jax.random.normal(kg, (Cout,), dtype=jnp.float32)
    beta = 0.1 * jax.random.normal(kbeta, (Cout,), dtype=jnp.float32)

    out = jax.block_until_ready(upblock2d_forward(x, w_hwio, bias, gamma, beta))
    ref = jax.block_until_ready(upblock2d_reference(x, w_hwio, bias, gamma, beta))

    assert out.shape == (N, Cout, 2 * H, 2 * W), out.shape
    max_err = float(jnp.max(jnp.abs(out - ref)))
    # bf16 matmul inputs (f32 accumulation) -> slightly looser tolerance.
    assert jnp.allclose(out, ref, atol=2e-2, rtol=2e-2), max_err
    print("KERNEL_OK")
</pallas_src>

<mosaic_0001>
module attributes {stable_mosaic.version = 11 : i64} {
  func.func @_conv_stats_kernel(%arg0: i32, %arg1: memref<512x128xbf16, #tpu.memory_space<vmem>>, %arg2: memref<128x128xbf16, #tpu.memory_space<vmem>>, %arg3: memref<512x128xf32, #tpu.memory_space<vmem>>, %arg4: memref<1x128xf32, #tpu.memory_space<vmem>>, %arg5: memref<1x128xf32, #tpu.memory_space<vmem>>) attributes {dimension_semantics = [#tpu.dimension_semantics<arbitrary>], iteration_bounds = array<i64: 4>, scalar_prefetch = 0 : i64, scratch_operands = 0 : i64, tpu.core_type = #tpu.core_type<tc>, window_params = [{transform_indices = @transform_0, window_bounds = array<i64: 512, 128>}, {pipeline_mode = #tpu.pipeline_mode<synchronous>, transform_indices = @transform_1, window_bounds = array<i64: 128, 128>}, {transform_indices = @transform_2, window_bounds = array<i64: 512, 128>}, {pipeline_mode = #tpu.pipeline_mode<synchronous>, transform_indices = @transform_3, window_bounds = array<i64: 1, 128>}, {pipeline_mode = #tpu.pipeline_mode<synchronous>, transform_indices = @transform_4, window_bounds = array<i64: 1, 128>}]} {
    %c0 = arith.constant 0 : index
    %c0_0 = arith.constant 0 : index
    %0 = vector.load %arg1[%c0, %c0_0] : memref<512x128xbf16, #tpu.memory_space<vmem>>, vector<512x128xbf16>
    %c0_1 = arith.constant 0 : index
    %c0_2 = arith.constant 0 : index
    %1 = vector.load %arg2[%c0_1, %c0_2] : memref<128x128xbf16, #tpu.memory_space<vmem>>, vector<128x128xbf16>
    %cst = arith.constant dense<0.000000e+00> : vector<512x128xf32>
    %2 = tpu.matmul %0, %1, %cst {dimension_numbers = #tpu.dot_dimension_numbers<[1], [0], [0], [1], [0, 0, 1, 1], [], []>} : vector<512x128xbf16>, vector<128x128xbf16>, vector<512x128xf32> -> vector<512x128xf32>
    %c0_3 = arith.constant 0 : index
    %c0_4 = arith.constant 0 : index
    %3 = vector.load %arg3[%c0_3, %c0_4] : memref<512x128xf32, #tpu.memory_space<vmem>>, vector<512x128xf32>
    tpu.vector_store %arg3[%c0_3, %c0_4], %2 {strides = array<i32>} : memref<512x128xf32, #tpu.memory_space<vmem>>, vector<512x128xf32>,
    %c0_i32 = arith.constant 0 : i32
    %4 = arith.cmpi eq, %arg0, %c0_i32 : i32
    %5 = arith.extui %4 : i1 to i32
    %c0_i32_5 = arith.constant 0 : i32
    %6 = arith.cmpi ne, %5, %c0_i32_5 : i32
    scf.if %6 {
      %cst_18 = arith.constant 0.000000e+00 : f32
      %19 = vector.broadcast %cst_18 : f32 to vector<1x128xf32>
      %c0_19 = arith.constant 0 : index
      %c0_20 = arith.constant 0 : index
      %20 = vector.load %arg4[%c0_19, %c0_20] : memref<1x128xf32, #tpu.memory_space<vmem>>, vector<1x128xf32>
      tpu.vector_store %arg4[%c0_19, %c0_20], %19 {strides = array<i32>} : memref<1x128xf32, #tpu.memory_space<vmem>>, vector<1x128xf32>,
      %cst_21 = arith.constant 0.000000e+00 : f32
      %21 = vector.broadcast %cst_21 : f32 to vector<1x128xf32>
      %c0_22 = arith.constant 0 : index
      %c0_23 = arith.constant 0 : index
      %22 = vector.load %arg5[%c0_22, %c0_23] : memref<1x128xf32, #tpu.memory_space<vmem>>, vector<1x128xf32>
      tpu.vector_store %arg5[%c0_22, %c0_23], %21 {strides = array<i32>} : memref<1x128xf32, #tpu.memory_space<vmem>>, vector<1x128xf32>,
    } else {
    }
    %c0_6 = arith.constant 0 : index
    %c0_7 = arith.constant 0 : index
    %7 = vector.load %arg3[%c0_6, %c0_7] : memref<512x128xf32, #tpu.memory_space<vmem>>, vector<512x128xf32>
    %c0_8 = arith.constant 0 : index
    %c0_9 = arith.constant 0 : index
    %8 = vector.load %arg4[%c0_8, %c0_9] : memref<1x128xf32, #tpu.memory_space<vmem>>, vector<1x128xf32>
    %cst_10 = arith.constant dense<0.000000e+00> : vector<128xf32>
    %9 = vector.multi_reduction <add>, %7, %cst_10 [0] : vector<512x128xf32> to vector<128xf32>
    %10 = vector.shape_cast %9 : vector<128xf32> to vector<1x128xf32>
    %11 = arith.addf %8, %10 : vector<1x128xf32>
    %c0_11 = arith.constant 0 : index
    %c0_12 = arith.constant 0 : index
    %12 = vector.load %arg4[%c0_11, %c0_12] : memref<1x128xf32, #tpu.memory_space<vmem>>, vector<1x128xf32>
    tpu.vector_store %arg4[%c0_11, %c0_12], %11 {strides = array<i32>} : memref<1x128xf32, #tpu.memory_space<vmem>>, vector<1x128xf32>,
    %c0_13 = arith.constant 0 : index
    %c0_14 = arith.constant 0 : index
    %13 = vector.load %arg5[%c0_13, %c0_14] : memref<1x128xf32, #tpu.memory_space<vmem>>, vector<1x128xf32>
    %14 = arith.mulf %7, %7 : vector<512x128xf32>
    %cst_15 = arith.constant dense<0.000000e+00> : vector<128xf32>
    %15 = vector.multi_reduction <add>, %14, %cst_15 [0] : vector<512x128xf32> to vector<128xf32>
    %16 = vector.shape_cast %15 : vector<128xf32> to vector<1x128xf32>
    %17 = arith.addf %13, %16 : vector<1x128xf32>
    %c0_16 = arith.constant 0 : index
    %c0_17 = arith.constant 0 : index
    %18 = vector.load %arg5[%c0_16, %c0_17] : memref<1x128xf32, #tpu.memory_space<vmem>>, vector<1x128xf32>
    tpu.vector_store %arg5[%c0_16, %c0_17], %17 {strides = array<i32>} : memref<1x128xf32, #tpu.memory_space<vmem>>, vector<1x128xf32>,
    return
  }
  func.func @transform_0(%arg0: i32) -> (i32, i32) {
    %c0_i32 = arith.constant 0 : i32
    %c0_i32_0 = arith.constant 0 : i32
    return %arg0, %c0_i32 : i32, i32
  }
  func.func @transform_1(%arg0: i32) -> (i32, i32) {
    %c0_i32 = arith.constant 0 : i32
    %c0_i32_0 = arith.constant 0 : i32
    %c0_i32_1 = arith.constant 0 : i32
    return %c0_i32, %c0_i32_0 : i32, i32
  }
  func.func @transform_2(%arg0: i32) -> (i32, i32) {
    %c0_i32 = arith.constant 0 : i32
    %c0_i32_0 = arith.constant 0 : i32
    return %arg0, %c0_i32 : i32, i32
  }
  func.func @transform_3(%arg0: i32) -> (i32, i32) {
    %c0_i32 = arith.constant 0 : i32
    %c0_i32_0 = arith.constant 0 : i32
    %c0_i32_1 = arith.constant 0 : i32
    return %c0_i32, %c0_i32_0 : i32, i32
  }
  func.func @transform_4(%arg0: i32) -> (i32, i32) {
    %c0_i32 = arith.constant 0 : i32
    %c0_i32_0 = arith.constant 0 : i32
    %c0_i32_1 = arith.constant 0 : i32
    return %c0_i32, %c0_i32_0 : i32, i32
  }
}

module attributes {stable_mosaic.version = 11 : i64} {
  func.func @_norm_relu_kernel(%arg0: i32, %arg1: memref<512x128xf32, #tpu.memory_space<vmem>>, %arg2: memref<1x128xf32, #tpu.memory_space<vmem>>, %arg3: memref<1x128xf32, #tpu.memory_space<vmem>>, %arg4: memref<512x128xf32, #tpu.memory_space<vmem>>) attributes {dimension_semantics = [#tpu.dimension_semantics<parallel>], iteration_bounds = array<i64: 4>, scalar_prefetch = 0 : i64, scratch_operands = 0 : i64, tpu.core_type = #tpu.core_type<tc>, window_params = [{transform_indices = @transform_0, window_bounds = array<i64: 512, 128>}, {pipeline_mode = #tpu.pipeline_mode<synchronous>, transform_indices = @transform_1, window_bounds = array<i64: 1, 128>}, {pipeline_mode = #tpu.pipeline_mode<synchronous>, transform_indices = @transform_2, window_bounds = array<i64: 1, 128>}, {transform_indices = @transform_3, window_bounds = array<i64: 512, 128>}]} {
    %c0 = arith.constant 0 : index
    %c0_0 = arith.constant 0 : index
    %0 = vector.load %arg1[%c0, %c0_0] : memref<512x128xf32, #tpu.memory_space<vmem>>, vector<512x128xf32>
    %c0_1 = arith.constant 0 : index
    %c0_2 = arith.constant 0 : index
    %1 = vector.load %arg2[%c0_1, %c0_2] : memref<1x128xf32, #tpu.memory_space<vmem>>, vector<1x128xf32>
    %2 = vector.broadcast %1 : vector<1x128xf32> to vector<512x128xf32>
    %3 = arith.mulf %0, %2 : vector<512x128xf32>
    %c0_3 = arith.constant 0 : index
    %c0_4 = arith.constant 0 : index
    %4 = vector.load %arg3[%c0_3, %c0_4] : memref<1x128xf32, #tpu.memory_space<vmem>>, vector<1x128xf32>
    %5 = vector.broadcast %4 : vector<1x128xf32> to vector<512x128xf32>
    %6 = arith.addf %3, %5 : vector<512x128xf32>
    %cst = arith.constant 0.000000e+00 : f32
    %7 = vector.broadcast %cst : f32 to vector<512x128xf32>
    %8 = arith.maximumf %6, %7 : vector<512x128xf32>
    %c0_5 = arith.constant 0 : index
    %c0_6 = arith.constant 0 : index
    %9 = vector.load %arg4[%c0_5, %c0_6] : memref<512x128xf32, #tpu.memory_space<vmem>>, vector<512x128xf32>
    tpu.vector_store %arg4[%c0_5, %c0_6], %8 {strides = array<i32>} : memref<512x128xf32, #tpu.memory_space<vmem>>, vector<512x128xf32>,
    return
  }
  func.func @transform_0(%arg0: i32) -> (i32, i32) {
    %c0_i32 = arith.constant 0 : i32
    %c0_i32_0 = arith.constant 0 : i32
    return %arg0, %c0_i32 : i32, i32
  }
  func.func @transform_1(%arg0: i32) -> (i32, i32) {
    %c0_i32 = arith.constant 0 : i32
    %c0_i32_0 = arith.constant 0 : i32
    %c0_i32_1 = arith.constant 0 : i32
    return %c0_i32, %c0_i32_0 : i32, i32
  }
  func.func @transform_2(%arg0: i32) -> (i32, i32) {
    %c0_i32 = arith.constant 0 : i32
    %c0_i32_0 = arith.constant 0 : i32
    %c0_i32_1 = arith.constant 0 : i32
    return %c0_i32, %c0_i32_0 : i32, i32
  }
  func.func @transform_3(%arg0: i32) -> (i32, i32) {
    %c0_i32 = arith.constant 0 : i32
    %c0_i32_0 = arith.constant 0 : i32
    return %arg0, %c0_i32 : i32, i32
  }
}

</mosaic_0001>

<llo_original>
// kernel: upblock2d_forward.3
$region0: #{upblock2d_forward.3}
  #allocation0 [shape = 'u32[]', space=smem, size = 0x4, offset = 0x4, fixed_abs, tag = 'smem constant byte address 0x4 - core index']
  #allocation1 [shape = 'u32[144,128]{1,0:T(1,128)}', space=vmem, size = 0x12000, scoped, tag = 'internal scratch']
  %s0 = inlined_call_operand.vmem [shape: f32[2048,128], index: 0, kind: input, shape index: {}]
  %s1 = inlined_call_operand.vmem [shape: f32[1,128], index: 1, kind: input, shape index: {}]
  %s2 = inlined_call_operand.vmem [shape: f32[1,128], index: 2, kind: input, shape index: {}]
  %s3 = inlined_call_operand.vmem [shape: f32[2048,128], index: 3, kind: output, shape index: {}]
  %s4 = sld [smem:[#allocation0]]
  $region45: #{upblock2d_forward.3} parent=0
    _
  %s6 = ssub.s32 1, %s4
  %s7 = scalar_select 0, %s6, %s4
  loop: start=0, step=1, limit=6
  $region2: #{upblock2d_forward.3} parent=0 // loop_pre_header
    _
  $region3: #{upblock2d_forward.3} parent=0 // loop_header
    %s9 = sphi 0, %s13
    %p10 = scmp.ge.s32.totalorder %s9, 6
    %s19 = sphi 0, %s21
    %s22 = sphi 0, %s19
    %s23 = sphi 0, %s22
    %s39 = sphi 0, %s23
    %s43 = sphi 0, %s43
    %s45 = sphi 0, %s43
    %s46 = sphi 0, %s45
    %s60 = sphi 0, %s46
    %s64 = sphi 0, %s64
    %s66 = sphi 0, %s64
    %s67 = sphi 0, %s66
    %s81 = sphi 0, %s67
    %s87 = sphi 0, %s89
    %s90 = sphi 0, %s87
    %s91 = sphi 0, %s90
    %s107 = sphi 0, %s91
  $region4: #{upblock2d_forward.3} parent=0 // loop_header_branch
    %12 = sbr.rel (%p10) target = $region8
  $region5: #{upblock2d_forward.3} parent=0 // loop_body
    %s14 = ssub.s32 %s9, 1
    %s15 = ssub.s32 %s9, 2
    %s16 = sadd.s32 %s9, 1
    %s17 = ssub.s32 %s9, %s16
    %p18 = scmp.eq.s32.totalorder %s17, 0
    %s20 = sadd.s32 %s19, 1
    %s21 = scalar_select %p18, %s19, %s20
    %p24 = pneg %p18
    %p25 = scmp.eq.s32.totalorder %s9, 3
    %p26 = por %p24, %p25
    %p27 = scmp.ne.s32.totalorder %s19, %s22
    %p28 = scmp.eq.s32.totalorder %s9, 0
    %p29 = por %p27, %p28
    %p30 = scmp.ne.s32.totalorder %s19, %s22
    %p31 = scmp.eq.s32.totalorder %s14, 3
    %p32 = por %p30, %p31
    %p33 = scmp.ne.s32.totalorder %s22, %s23
    %p34 = scmp.eq.s32.totalorder %s14, 0
    %p35 = por %p33, %p34
    %p36 = scmp.ne.s32.totalorder %s22, %s23
    %p37 = scmp.eq.s32.totalorder %s15, 3
    %p38 = por %p36, %p37
    %p40 = scmp.ne.s32.totalorder %s23, %s39
    %p41 = scmp.eq.s32.totalorder %s15, 0
    %p42 = por %p40, %p41
    %s44 = sadd.s32 %s43, 1
    %p47 = scmp.eq.s32.totalorder %s9, 3
    %p48 = scmp.ne.s32.totalorder %s43, %s45
    %p49 = scmp.eq.s32.totalorder %s9, 0
    %p50 = por %p48, %p49
    %p51 = scmp.ne.s32.totalorder %s43, %s45
    %p52 = scmp.eq.s32.totalorder %s14, 3
    %p53 = por %p51, %p52
    %p54 = scmp.ne.s32.totalorder %s45, %s46
    %p55 = scmp.eq.s32.totalorder %s14, 0
    %p56 = por %p54, %p55
    %p57 = scmp.ne.s32.totalorder %s45, %s46
    %p58 = scmp.eq.s32.totalorder %s15, 3
    %p59 = por %p57, %p58
    %p61 = scmp.ne.s32.totalorder %s46, %s60
    %p62 = scmp.eq.s32.totalorder %s15, 0
    %p63 = por %p61, %p62
    %s65 = sadd.s32 %s64, 1
    %p68 = scmp.eq.s32.totalorder %s9, 3
    %p69 = scmp.ne.s32.totalorder %s64, %s66
    %p70 = scmp.eq.s32.totalorder %s9, 0
    %p71 = por %p69, %p70
    %p72 = scmp.ne.s32.totalorder %s64, %s66
    %p73 = scmp.eq.s32.totalorder %s14, 3
    %p74 = por %p72, %p73
    %p75 = scmp.ne.s32.totalorder %s66, %s67
    %p76 = scmp.eq.s32.totalorder %s14, 0
    %p77 = por %p75, %p76
    %p78 = scmp.ne.s32.totalorder %s66, %s67
    %p79 = scmp.eq.s32.totalorder %s15, 3
    %p80 = por %p78, %p79
    %p82 = scmp.ne.s32.totalorder %s67, %s81
    %p83 = scmp.eq.s32.totalorder %s15, 0
    %p84 = por %p82, %p83
    %s85 = ssub.s32 %s9, %s16
    %p86 = scmp.eq.s32.totalorder %s85, 0
    %s88 = sadd.s32 %s87, 1
    %s89 = scalar_select %p86, %s87, %s88
    %p92 = pneg %p86
    %p93 = scmp.eq.s32.totalorder %s9, 3
    %p94 = por %p92, %p93
    %p95 = scmp.ne.s32.totalorder %s87, %s90
    %p96 = scmp.eq.s32.totalorder %s9, 0
    %p97 = por %p95, %p96
    %p98 = scmp.ne.s32.totalorder %s87, %s90
    %p99 = scmp.eq.s32.totalorder %s14, 3
    %p100 = por %p98, %p99
    %p101 = scmp.ne.s32.totalorder %s90, %s91
    %p102 = scmp.eq.s32.totalorder %s14, 0
    %p103 = por %p101, %p102
    %p104 = scmp.ne.s32.totalorder %s90, %s91
    %p105 = scmp.eq.s32.totalorder %s15, 3
    %p106 = por %p104, %p105
    %p108 = scmp.ne.s32.totalorder %s91, %s107
    %p109 = scmp.eq.s32.totalorder %s15, 0
    %p110 = por %p108, %p109
    %p111 = scmp.le.s32.totalorder 1, %s9
    %p112 = scmp.lt.s32.totalorder %s9, 5
    %p113 = pnand %p111, %p112
    %p114 = pneg %p113
    // Predicated region
    $region9: #{upblock2d_forward.3} parent=5 // pred_check
      _
    $region10: #{upblock2d_forward.3} parent=5 // pred_check_branch
      %116 = sbr.rel (%p113) target = $region12
    $region11: #{upblock2d_forward.3} parent=5 // pred_region
      %s117 = ssub.s32 %s9, 1
      // Predicated region
      $region13: #{upblock2d_forward.3} parent=11 // pred_check
        %p118 = pneg %p56
      $region14: #{upblock2d_forward.3} parent=11 // pred_check_branch
        %120 = sbr.rel (%p118) target = $region16
      $region15: #{upblock2d_forward.3} parent=11 // pred_region
        _
      $region16: #{upblock2d_forward.3} parent=11 // pred_fallthru
        _
      // Predicated region
      $region17: #{upblock2d_forward.3} parent=11 // pred_check
        %p121 = pneg %p77
      $region18: #{upblock2d_forward.3} parent=11 // pred_check_branch
        %123 = sbr.rel (%p121) target = $region20
      $region19: #{upblock2d_forward.3} parent=11 // pred_region
        _
      $region20: #{upblock2d_forward.3} parent=11 // pred_fallthru
        _
    $region12: #{upblock2d_forward.3} parent=5 // pred_fallthru
      _
    %p124 = scmp.lt.s32.totalorder %s9, 4
    // Predicated region
    $region21: #{upblock2d_forward.3} parent=5 // pred_check
      %p125 = pneg %p124
    $region22: #{upblock2d_forward.3} parent=5 // pred_check_branch
      %127 = sbr.rel (%p125) target = $region24
    $region23: #{upblock2d_forward.3} parent=5 // pred_region
      // Predicated region
      $region25: #{upblock2d_forward.3} parent=23 // pred_check
        %p128 = pneg %p29
      $region26: #{upblock2d_forward.3} parent=23 // pred_check_branch
        %130 = sbr.rel (%p128) target = $region28
      $region27: #{upblock2d_forward.3} parent=23 // pred_region
        %s131 = smul.u32 64, %s9
        %p132 = scmp.lt.s32.totalorder %s131, 255
        %s133 = scalar_select %p132, %s131, 255
        %s134 = smul.addr %s133, 8
        %s135 = scalar_lea.vmem %s0, %s134
        %s136 = smul.u32 64, %s9
      $region28: #{upblock2d_forward.3} parent=23 // pred_fallthru
        _
    $region24: #{upblock2d_forward.3} parent=5 // pred_fallthru
      _
    %p137 = scmp.le.s32.totalorder 1, %s9
    %p138 = scmp.lt.s32.totalorder %s9, 5
    %p139 = pnand %p137, %p138
    %p140 = pneg %p139
    // Predicated region
    $region29: #{upblock2d_forward.3} parent=5 // pred_check
      _
    $region30: #{upblock2d_forward.3} parent=5 // pred_check_branch
      %142 = sbr.rel (%p139) target = $region32
    $region31: #{upblock2d_forward.3} parent=5 // pred_region
      %s143 = ssub.s32 %s9, 1
      %s144 = smul.u32 64, %s14
      %p145 = scmp.lt.s32.totalorder %s144, 255
      %s146 = scalar_select %p145, %s144, 255
      %s147 = smul.addr %s146, 8
      %s148 = scalar_lea.vmem %s0, %s147
      %p149 = pneg %p35
      %p150 = pneg %p32
      %p151 = pneg %p56
      %p152 = pneg %p53
      %p153 = pneg %p77
      %p154 = pneg %p74
      %p155 = pneg %p103
      %p156 = pneg %p100
      %s157 = smul.u32 64, %s14
      %p158 = scmp.lt.s32.totalorder %s157, 255
      %s159 = scalar_select %p158, %s157, 255
      %s160 = smul.addr %s159, 8
      %s161 = scalar_lea.vmem %s3, %s160
      %s162 = smul.u32 64, %s14
      %p163 = scmp.lt.s32.totalorder %s162, 255
      %s164 = scalar_select %p163, %s162, 255
      %s165 = smul.addr %s164, 8
      %s166 = scalar_lea.vmem %s0, %s165
      %s167 = smul.u32 64, %s14
      %s168 = smul.u32 64, %s14
      %p169 = scmp.lt.s32.totalorder %s168, 255
      %s170 = scalar_select %p169, %s168, 255
      %s171 = smul.addr %s170, 8
      %s172 = scalar_lea.vmem %s3, %s171
      %s173 = smul.u32 64, %s14
      %v174 = vld [vmem:[%s166] sm:$0xff]
      %v175 = vld [vmem:[%s166 + $0x8] sm:$0xff]
      %v176 = vld [vmem:[%s166 + $0x10] sm:$0xff]
      %v177 = vld [vmem:[%s166 + $0x18] sm:$0xff]
      %v178 = vld [vmem:[%s166 + $0x20] sm:$0xff]
      %v179 = vld [vmem:[%s166 + $0x28] sm:$0xff]
      %v180 = vld [vmem:[%s166 + $0x30] sm:$0xff]
      %v181 = vld [vmem:[%s166 + $0x38] sm:$0xff]
      %v182 = vld [vmem:[%s166 + $0x40] sm:$0xff]
      %v183 = vld [vmem:[%s166 + $0x48] sm:$0xff]
      %v184 = vld [vmem:[%s166 + $0x50] sm:$0xff]
      %v185 = vld [vmem:[%s166 + $0x58] sm:$0xff]
      %v186 = vld [vmem:[%s166 + $0x60] sm:$0xff]
      %v187 = vld [vmem:[%s166 + $0x68] sm:$0xff]
      %v188 = vld [vmem:[%s166 + $0x70] sm:$0xff]
      %v189 = vld [vmem:[%s166 + $0x78] sm:$0xff]
      %v190 = vld [vmem:[%s166 + $0x80] sm:$0xff]
      %v191 = vld [vmem:[%s166 + $0x88] sm:$0xff]
      %v192 = vld [vmem:[%s166 + $0x90] sm:$0xff]
      %v193 = vld [vmem:[%s166 + $0x98] sm:$0xff]
      %v194 = vld [vmem:[%s166 + $0xa0] sm:$0xff]
      %v195 = vld [vmem:[%s166 + $0xa8] sm:$0xff]
      %v196 = vld [vmem:[%s166 + $0xb0] sm:$0xff]
      %v197 = vld [vmem:[%s166 + $0xb8] sm:$0xff]
      %v198 = vld [vmem:[%s166 + $0xc0] sm:$0xff]
      %v199 = vld [vmem:[%s166 + $0xc8] sm:$0xff]
      %v200 = vld [vmem:[%s166 + $0xd0] sm:$0xff]
      %v201 = vld [vmem:[%s166 + $0xd8] sm:$0xff]
      %v202 = vld [vmem:[%s166 + $0xe0] sm:$0xff]
      %v203 = vld [vmem:[%s166 + $0xe8] sm:$0xff]
      %v204 = vld [vmem:[%s166 + $0xf0] sm:$0xff]
      %v205 = vld [vmem:[%s166 + $0xf8] sm:$0xff]
      %v206 = vld [vmem:[%s166 + $0x100] sm:$0xff]
      %v207 = vld [vmem:[%s166 + $0x108] sm:$0xff]
      %v208 = vld [vmem:[%s166 + $0x110] sm:$0xff]
      %v209 = vld [vmem:[%s166 + $0x118] sm:$0xff]
      %v210 = vld [vmem:[%s166 + $0x120] sm:$0xff]
      %v211 = vld [vmem:[%s166 + $0x128] sm:$0xff]
      %v212 = vld [vmem:[%s166 + $0x130] sm:$0xff]
      %v213 = vld [vmem:[%s166 + $0x138] sm:$0xff]
      %v214 = vld [vmem:[%s166 + $0x140] sm:$0xff]
      %v215 = vld [vmem:[%s166 + $0x148] sm:$0xff]
      %v216 = vld [vmem:[%s166 + $0x150] sm:$0xff]
      %v217 = vld [vmem:[%s166 + $0x158] sm:$0xff]
      %v218 = vld [vmem:[%s166 + $0x160] sm:$0xff]
      %v219 = vld [vmem:[%s166 + $0x168] sm:$0xff]
      %v220 = vld [vmem:[%s166 + $0x170] sm:$0xff]
      %v221 = vld [vmem:[%s166 + $0x178] sm:$0xff]
      %v222 = vld [vmem:[%s166 + $0x180] sm:$0xff]
      %v223 = vld [vmem:[%s166 + $0x188] sm:$0xff]
      %v224 = vld [vmem:[%s166 + $0x190] sm:$0xff]
      %v225 = vld [vmem:[%s166 + $0x198] sm:$0xff]
      %v226 = vld [vmem:[%s166 + $0x1a0] sm:$0xff]
      %v227 = vld [vmem:[%s166 + $0x1a8] sm:$0xff]
      %v228 = vld [vmem:[%s166 + $0x1b0] sm:$0xff]
      %v229 = vld [vmem:[%s166 + $0x1b8] sm:$0xff]
      %v230 = vld [vmem:[%s166 + $0x1c0] sm:$0xff]
      %v231 = vld [vmem:[%s166 + $0x1c8] sm:$0xff]
      %v232 = vld [vmem:[%s166 + $0x1d0] sm:$0xff]
      %v233 = vld [vmem:[%s166 + $0x1d8] sm:$0xff]
      %v234 = vld [vmem:[%s166 + $0x1e0] sm:$0xff]
      %v235 = vld [vmem:[%s166 + $0x1e8] sm:$0xff]
      %v236 = vld [vmem:[%s166 + $0x1f0] sm:$0xff]
      %v237 = vld [vmem:[%s166 + $0x1f8] sm:$0xff]
      %v238 = vld [vmem:[%s1] sm:$0x1]
      %v240 = vlaneseq
      %v241 = vshrl.u32 %v240, 7
      %v242 = vsub.s32 0, %v241
      %v243 = vrot.slane %v238, %v242
      %v245 = vmul.f32 %v174, %v243
      %v246 = vmul.f32 %v175, %v243
      %v247 = vmul.f32 %v176, %v243
      %v248 = vmul.f32 %v177, %v243
      %v249 = vmul.f32 %v178, %v243
      %v250 = vmul.f32 %v179, %v243
      %v251 = vmul.f32 %v180, %v243
      %v252 = vmul.f32 %v181, %v243
      %v253 = vmul.f32 %v182, %v243
      %v254 = vmul.f32 %v183, %v243
      %v255 = vmul.f32 %v184, %v243
      %v256 = vmul.f32 %v185, %v243
      %v257 = vmul.f32 %v186, %v243
      %v258 = vmul.f32 %v187, %v243
      %v259 = vmul.f32 %v188, %v243
      %v260 = vmul.f32 %v189, %v243
      %v261 = vmul.f32 %v190, %v243
      %v262 = vmul.f32 %v191, %v243
      %v263 = vmul.f32 %v192, %v243
      %v264 = vmul.f32 %v193, %v243
      %v265 = vmul.f32 %v194, %v243
      %v266 = vmul.f32 %v195, %v243
      %v267 = vmul.f32 %v196, %v243
      %v268 = vmul.f32 %v197, %v243
      %v269 = vmul.f32 %v198, %v243
      %v270 = vmul.f32 %v199, %v243
      %v271 = vmul.f32 %v200, %v243
      %v272 = vmul.f32 %v201, %v243
      %v273 = vmul.f32 %v202, %v243
      %v274 = vmul.f32 %v203, %v243
      %v275 = vmul.f32 %v204, %v243
      %v276 = vmul.f32 %v205, %v243
      %v277 = vmul.f32 %v206, %v243
      %v278 = vmul.f32 %v207, %v243
      %v279 = vmul.f32 %v208, %v243
      %v280 = vmul.f32 %v209, %v243
      %v281 = vmul.f32 %v210, %v243
      %v282 = vmul.f32 %v211, %v243
      %v283 = vmul.f32 %v212, %v243
      %v284 = vmul.f32 %v213, %v243
      %v285 = vmul.f32 %v214, %v243
      %v286 = vmul.f32 %v215, %v243
      %v287 = vmul.f32 %v216, %v243
      %v288 = vmul.f32 %v217, %v243
      %v289 = vmul.f32 %v218, %v243
      %v290 = vmul.f32 %v219, %v243
      %v291 = vmul.f32 %v220, %v243
      %v292 = vmul.f32 %v221, %v243
      %v293 = vmul.f32 %v222, %v243
      %v294 = vmul.f32 %v223, %v243
      %v295 = vmul.f32 %v224, %v243
      %v296 = vmul.f32 %v225, %v243
      %v297 = vmul.f32 %v226, %v243
      %v298 = vmul.f32 %v227, %v243
      %v299 = vmul.f32 %v228, %v243
      %v300 = vmul.f32 %v229, %v243
      %v301 = vmul.f32 %v230, %v243
      %v302 = vmul.f32 %v231, %v243
      %v303 = vmul.f32 %v232, %v243
      %v304 = vmul.f32 %v233, %v243
      %v305 = vmul.f32 %v234, %v243
      %v306 = vmul.f32 %v235, %v243
      %v307 = vmul.f32 %v236, %v243
      %v308 = vmul.f32 %v237, %v243
      %v309 = vld [vmem:[%s2] sm:$0x1]
      %v311 = vlaneseq
      %v312 = vshrl.u32 %v311, 7
      %v313 = vsub.s32 0, %v312
      %v314 = vrot.slane %v309, %v313
      %v316 = vadd.f32 %v245, %v314
      %v317 = vadd.f32 %v246, %v314
      %v318 = vadd.f32 %v247, %v314
      %v319 = vadd.f32 %v248, %v314
      %v320 = vadd.f32 %v249, %v314
      %v321 = vadd.f32 %v250, %v314
      %v322 = vadd.f32 %v251, %v314
      %v323 = vadd.f32 %v252, %v314
      %v324 = vadd.f32 %v253, %v314
      %v325 = vadd.f32 %v254, %v314
      %v326 = vadd.f32 %v255, %v314
      %v327 = vadd.f32 %v256, %v314
      %v328 = vadd.f32 %v257, %v314
      %v329 = vadd.f32 %v258, %v314
      %v330 = vadd.f32 %v259, %v314
      %v331 = vadd.f32 %v260, %v314
      %v332 = vadd.f32 %v261, %v314
      %v333 = vadd.f32 %v262, %v314
      %v334 = vadd.f32 %v263, %v314
      %v335 = vadd.f32 %v264, %v314
      %v336 = vadd.f32 %v265, %v314
      %v337 = vadd.f32 %v266, %v314
      %v338 = vadd.f32 %v267, %v314
      %v339 = vadd.f32 %v268, %v314
      %v340 = vadd.f32 %v269, %v314
      %v341 = vadd.f32 %v270, %v314
      %v342 = vadd.f32 %v271, %v314
      %v343 = vadd.f32 %v272, %v314
      %v344 = vadd.f32 %v273, %v314
      %v345 = vadd.f32 %v274, %v314
      %v346 = vadd.f32 %v275, %v314
      %v347 = vadd.f32 %v276, %v314
      %v348 = vadd.f32 %v277, %v314
      %v349 = vadd.f32 %v278, %v314
      %v350 = vadd.f32 %v279, %v314
      %v351 = vadd.f32 %v280, %v314
      %v352 = vadd.f32 %v281, %v314
      %v353 = vadd.f32 %v282, %v314
      %v354 = vadd.f32 %v283, %v314
      %v355 = vadd.f32 %v284, %v314
      %v356 = vadd.f32 %v285, %v314
      %v357 = vadd.f32 %v286, %v314
      %v358 = vadd.f32 %v287, %v314
      %v359 = vadd.f32 %v288, %v314
      %v360 = vadd.f32 %v289, %v314
      %v361 = vadd.f32 %v290, %v314
      %v362 = vadd.f32 %v291, %v314
      %v363 = vadd.f32 %v292, %v314
      %v364 = vadd.f32 %v293, %v314
      %v365 = vadd.f32 %v294, %v314
      %v366 = vadd.f32 %v295, %v314
      %v367 = vadd.f32 %v296, %v314
      %v368 = vadd.f32 %v297, %v314
      %v369 = vadd.f32 %v298, %v314
      %v370 = vadd.f32 %v299, %v314
      %v371 = vadd.f32 %v300, %v314
      %v372 = vadd.f32 %v301, %v314
      %v373 = vadd.f32 %v302, %v314
      %v374 = vadd.f32 %v303, %v314
      %v375 = vadd.f32 %v304, %v314
      %v376 = vadd.f32 %v305, %v314
      %v377 = vadd.f32 %v306, %v314
      %v378 = vadd.f32 %v307, %v314
      %v379 = vadd.f32 %v308, %v314
      %v380 = vmax.f32 %v316, 0.0
      %v381 = vmax.f32 %v317, 0.0
      %v382 = vmax.f32 %v318, 0.0
      %v383 = vmax.f32 %v319, 0.0
      %v384 = vmax.f32 %v320, 0.0
      %v385 = vmax.f32 %v321, 0.0
      %v386 = vmax.f32 %v322, 0.0
      %v387 = vmax.f32 %v323, 0.0
      %v388 = vmax.f32 %v324, 0.0
      %v389 = vmax.f32 %v325, 0.0
      %v390 = vmax.f32 %v326, 0.0
      %v391 = vmax.f32 %v327, 0.0
      %v392 = vmax.f32 %v328, 0.0
      %v393 = vmax.f32 %v329, 0.0
      %v394 = vmax.f32 %v330, 0.0
      %v395 = vmax.f32 %v331, 0.0
      %v396 = vmax.f32 %v332, 0.0
      %v397 = vmax.f32 %v333, 0.0
      %v398 = vmax.f32 %v334, 0.0
      %v399 = vmax.f32 %v335, 0.0
      %v400 = vmax.f32 %v336, 0.0
      %v401 = vmax.f32 %v337, 0.0
      %v402 = vmax.f32 %v338, 0.0
      %v403 = vmax.f32 %v339, 0.0
      %v404 = vmax.f32 %v340, 0.0
      %v405 = vmax.f32 %v341, 0.0
      %v406 = vmax.f32 %v342, 0.0
      %v407 = vmax.f32 %v343, 0.0
      %v408 = vmax.f32 %v344, 0.0
      %v409 = vmax.f32 %v345, 0.0
      %v410 = vmax.f32 %v346, 0.0
      %v411 = vmax.f32 %v347, 0.0
      %v412 = vmax.f32 %v348, 0.0
      %v413 = vmax.f32 %v349, 0.0
      %v414 = vmax.f32 %v350, 0.0
      %v415 = vmax.f32 %v351, 0.0
      %v416 = vmax.f32 %v352, 0.0
      %v417 = vmax.f32 %v353, 0.0
      %v418 = vmax.f32 %v354, 0.0
      %v419 = vmax.f32 %v355, 0.0
      %v420 = vmax.f32 %v356, 0.0
      %v421 = vmax.f32 %v357, 0.0
      %v422 = vmax.f32 %v358, 0.0
      %v423 = vmax.f32 %v359, 0.0
      %v424 = vmax.f32 %v360, 0.0
      %v425 = vmax.f32 %v361, 0.0
      %v426 = vmax.f32 %v362, 0.0
      %v427 = vmax.f32 %v363, 0.0
      %v428 = vmax.f32 %v364, 0.0
      %v429 = vmax.f32 %v365, 0.0
      %v430 = vmax.f32 %v366, 0.0
      %v431 = vmax.f32 %v367, 0.0
      %v432 = vmax.f32 %v368, 0.0
      %v433 = vmax.f32 %v369, 0.0
      %v434 = vmax.f32 %v370, 0.0
      %v435 = vmax.f32 %v371, 0.0
      %v436 = vmax.f32 %v372, 0.0
      %v437 = vmax.f32 %v373, 0.0
      %v438 = vmax.f32 %v374, 0.0
      %v439 = vmax.f32 %v375, 0.0
      %v440 = vmax.f32 %v376, 0.0
      %v441 = vmax.f32 %v377, 0.0
      %v442 = vmax.f32 %v378, 0.0
      %v443 = vmax.f32 %v379, 0.0
      %444 = vst [vmem:[%s172] sm:$0xff] %v380
      %445 = vst [vmem:[%s172 + $0x8] sm:$0xff] %v381
      %446 = vst [vmem:[%s172 + $0x10] sm:$0xff] %v382
      %447 = vst [vmem:[%s172 + $0x18] sm:$0xff] %v383
      %448 = vst [vmem:[%s172 + $0x20] sm:$0xff] %v384
      %449 = vst [vmem:[%s172 + $0x28] sm:$0xff] %v385
      %450 = vst [vmem:[%s172 + $0x30] sm:$0xff] %v386
      %451 = vst [vmem:[%s172 + $0x38] sm:$0xff] %v387
      %452 = vst [vmem:[%s172 + $0x40] sm:$0xff] %v388
      %453 = vst [vmem:[%s172 + $0x48] sm:$0xff] %v389
      %454 = vst [vmem:[%s172 + $0x50] sm:$0xff] %v390
      %455 = vst [vmem:[%s172 + $0x58] sm:$0xff] %v391
      %456 = vst [vmem:[%s172 + $0x60] sm:$0xff] %v392
      %457 = vst [vmem:[%s172 + $0x68] sm:$0xff] %v393
      %458 = vst [vmem:[%s172 + $0x70] sm:$0xff] %v394
      %459 = vst [vmem:[%s172 + $0x78] sm:$0xff] %v395
      %460 = vst [vmem:[%s172 + $0x80] sm:$0xff] %v396
      %461 = vst [vmem:[%s172 + $0x88] sm:$0xff] %v397
      %462 = vst [vmem:[%s172 + $0x90] sm:$0xff] %v398
      %463 = vst [vmem:[%s172 + $0x98] sm:$0xff] %v399
      %464 = vst [vmem:[%s172 + $0xa0] sm:$0xff] %v400
      %465 = vst [vmem:[%s172 + $0xa8] sm:$0xff] %v401
      %466 = vst [vmem:[%s172 + $0xb0] sm:$0xff] %v402
      %467 = vst [vmem:[%s172 + $0xb8] sm:$0xff] %v403
      %468 = vst [vmem:[%s172 + $0xc0] sm:$0xff] %v404
      %469 = vst [vmem:[%s172 + $0xc8] sm:$0xff] %v405
      %470 = vst [vmem:[%s172 + $0xd0] sm:$0xff] %v406
      %471 = vst [vmem:[%s172 + $0xd8] sm:$0xff] %v407
      %472 = vst [vmem:[%s172 + $0xe0] sm:$0xff] %v408
      %473 = vst [vmem:[%s172 + $0xe8] sm:$0xff] %v409
      %474 = vst [vmem:[%s172 + $0xf0] sm:$0xff] %v410
      %475 = vst [vmem:[%s172 + $0xf8] sm:$0xff] %v411
      %476 = vst [vmem:[%s172 + $0x100] sm:$0xff] %v412
      %477 = vst [vmem:[%s172 + $0x108] sm:$0xff] %v413
      %478 = vst [vmem:[%s172 + $0x110] sm:$0xff] %v414
      %479 = vst [vmem:[%s172 + $0x118] sm:$0xff] %v415
      %480 = vst [vmem:[%s172 + $0x120] sm:$0xff] %v416
      %481 = vst [vmem:[%s172 + $0x128] sm:$0xff] %v417
      %482 = vst [vmem:[%s172 + $0x130] sm:$0xff] %v418
      %483 = vst [vmem:[%s172 + $0x138] sm:$0xff] %v419
      %484 = vst [vmem:[%s172 + $0x140] sm:$0xff] %v420
      %485 = vst [vmem:[%s172 + $0x148] sm:$0xff] %v421
      %486 = vst [vmem:[%s172 + $0x150] sm:$0xff] %v422
      %487 = vst [vmem:[%s172 + $0x158] sm:$0xff] %v423
      %488 = vst [vmem:[%s172 + $0x160] sm:$0xff] %v424
      %489 = vst [vmem:[%s172 + $0x168] sm:$0xff] %v425
      %490 = vst [vmem:[%s172 + $0x170] sm:$0xff] %v426
      %491 = vst [vmem:[%s172 + $0x178] sm:$0xff] %v427
      %492 = vst [vmem:[%s172 + $0x180] sm:$0xff] %v428
      %493 = vst [vmem:[%s172 + $0x188] sm:$0xff] %v429
      %494 = vst [vmem:[%s172 + $0x190] sm:$0xff] %v430
      %495 = vst [vmem:[%s172 + $0x198] sm:$0xff] %v431
      %496 = vst [vmem:[%s172 + $0x1a0] sm:$0xff] %v432
      %497 = vst [vmem:[%s172 + $0x1a8] sm:$0xff] %v433
      %498 = vst [vmem:[%s172 + $0x1b0] sm:$0xff] %v434
      %499 = vst [vmem:[%s172 + $0x1b8] sm:$0xff] %v435
      %500 = vst [vmem:[%s172 + $0x1c0] sm:$0xff] %v436
      %501 = vst [vmem:[%s172 + $0x1c8] sm:$0xff] %v437
      %502 = vst [vmem:[%s172 + $0x1d0] sm:$0xff] %v438
      %503 = vst [vmem:[%s172 + $0x1d8] sm:$0xff] %v439
      %504 = vst [vmem:[%s172 + $0x1e0] sm:$0xff] %v440
      %505 = vst [vmem:[%s172 + $0x1e8] sm:$0xff] %v441
      %506 = vst [vmem:[%s172 + $0x1f0] sm:$0xff] %v442
      %507 = vst [vmem:[%s172 + $0x1f8] sm:$0xff] %v443
      %s508 = smul.u32 64, %s14
      %p509 = scmp.lt.s32.totalorder %s508, 255
      %s510 = scalar_select %p509, %s508, 255
      %s511 = smul.addr %s510, 8
      %s512 = scalar_lea.vmem %s3, %s511
      // Predicated region
      $region33: #{upblock2d_forward.3} parent=31 // pred_check
        %p513 = pneg %p100
      $region34: #{upblock2d_forward.3} parent=31 // pred_check_branch
        %515 = sbr.rel (%p513) target = $region36
      $region35: #{upblock2d_forward.3} parent=31 // pred_region
        %s516 = smul.u32 64, %s14
      $region36: #{upblock2d_forward.3} parent=31 // pred_fallthru
        _
    $region32: #{upblock2d_forward.3} parent=5 // pred_fallthru
      _
    %p517 = scmp.le.s32.totalorder 2, %s9
    // Predicated region
    $region37: #{upblock2d_forward.3} parent=5 // pred_check
      %p518 = pneg %p517
    $region38: #{upblock2d_forward.3} parent=5 // pred_check_branch
      %520 = sbr.rel (%p518) target = $region40
    $region39: #{upblock2d_forward.3} parent=5 // pred_region
      %s521 = ssub.s32 %s9, 2
      // Predicated region
      $region41: #{upblock2d_forward.3} parent=39 // pred_check
        %p522 = pneg %p106
      $region42: #{upblock2d_forward.3} parent=39 // pred_check_branch
        %524 = sbr.rel (%p522) target = $region44
      $region43: #{upblock2d_forward.3} parent=39 // pred_region
        %s525 = smul.u32 64, %s15
        %p526 = scmp.lt.s32.totalorder %s525, 255
        %s527 = scalar_select %p526, %s525, 255
        %s528 = smul.addr %s527, 8
        %s529 = scalar_lea.vmem %s3, %s528
      $region44: #{upblock2d_forward.3} parent=39 // pred_fallthru
        _
    $region40: #{upblock2d_forward.3} parent=5 // pred_fallthru
      _
  $region6: #{upblock2d_forward.3} parent=0 // loop_footer
    %s13 = sadd.s32 1, %s9
  $region7: #{upblock2d_forward.3} parent=0 // loop_footer_branch
    %8 = sbr.rel target = $region3
  $region8: #{upblock2d_forward.3} parent=0 // loop_exit
    _

// kernel: upblock2d_forward.2
$region0: #{upblock2d_forward.2}
  #allocation0 [shape = 'u32[]', space=smem, size = 0x4, offset = 0x4, fixed_abs, tag = 'smem constant byte address 0x4 - core index']
  #allocation1 [shape = 'u32[144,128]{1,0:T(1,128)}', space=vmem, size = 0x12000, scoped, tag = 'internal scratch']
  %s0 = inlined_call_operand.vmem [shape: bf16[2048,128], index: 0, kind: input, shape index: {}]
  %s1 = inlined_call_operand.vmem [shape: bf16[128,128], index: 1, kind: input, shape index: {}]
  %s2 = inlined_call_operand.vmem [shape: f32[2048,128], index: 2, kind: output, shape index: {0}]
  %s3 = inlined_call_operand.vmem [shape: f32[1,128], index: 3, kind: output, shape index: {1}]
  %s4 = inlined_call_operand.vmem [shape: f32[1,128], index: 4, kind: output, shape index: {2}]
  %5 = xla_tuple %s2, %s3, %s4
  %s6 = sld [smem:[#allocation0]]
  $region61: #{upblock2d_forward.2} parent=0
    _
  %s8 = ssub.s32 1, %s6
  %s9 = scalar_select 0, %s8, %s6
  loop: start=0, step=1, limit=6
  $region2: #{upblock2d_forward.2} parent=0 // loop_pre_header
    _
  $region3: #{upblock2d_forward.2} parent=0 // loop_header
    %s11 = sphi 0, %s15
    %p12 = scmp.ge.s32.totalorder %s11, 6
    %s21 = sphi 0, %s23
    %s24 = sphi 0, %s21
    %s25 = sphi 0, %s24
    %s41 = sphi 0, %s25
    %s45 = sphi 0, %s45
    %s47 = sphi 0, %s45
    %s48 = sphi 0, %s47
    %s62 = sphi 0, %s48
    %s68 = sphi 0, %s70
    %s71 = sphi 0, %s68
    %s72 = sphi 0, %s71
    %s88 = sphi 0, %s72
    %s92 = sphi 0, %s92
    %s94 = sphi 0, %s92
    %s95 = sphi 0, %s94
    %s109 = sphi 0, %s95
    %s113 = sphi 0, %s113
    %s115 = sphi 0, %s113
    %s116 = sphi 0, %s115
    %s130 = sphi 0, %s116
  $region4: #{upblock2d_forward.2} parent=0 // loop_header_branch
    %14 = sbr.rel (%p12) target = $region8
  $region5: #{upblock2d_forward.2} parent=0 // loop_body
    %s16 = ssub.s32 %s11, 1
    %s17 = ssub.s32 %s11, 2
    %s18 = sadd.s32 %s11, 1
    %s19 = ssub.s32 %s11, %s18
    %p20 = scmp.eq.s32.totalorder %s19, 0
    %s22 = sadd.s32 %s21, 1
    %s23 = scalar_select %p20, %s21, %s22
    %p26 = pneg %p20
    %p27 = scmp.eq.s32.totalorder %s11, 3
    %p28 = por %p26, %p27
    %p29 = scmp.ne.s32.totalorder %s21, %s24
    %p30 = scmp.eq.s32.totalorder %s11, 0
    %p31 = por %p29, %p30
    %p32 = scmp.ne.s32.totalorder %s21, %s24
    %p33 = scmp.eq.s32.totalorder %s16, 3
    %p34 = por %p32, %p33
    %p35 = scmp.ne.s32.totalorder %s24, %s25
    %p36 = scmp.eq.s32.totalorder %s16, 0
    %p37 = por %p35, %p36
    %p38 = scmp.ne.s32.totalorder %s24, %s25
    %p39 = scmp.eq.s32.totalorder %s17, 3
    %p40 = por %p38, %p39
    %p42 = scmp.ne.s32.totalorder %s25, %s41
    %p43 = scmp.eq.s32.totalorder %s17, 0
    %p44 = por %p42, %p43
    %s46 = sadd.s32 %s45, 1
    %p49 = scmp.eq.s32.totalorder %s11, 3
    %p50 = scmp.ne.s32.totalorder %s45, %s47
    %p51 = scmp.eq.s32.totalorder %s11, 0
    %p52 = por %p50, %p51
    %p53 = scmp.ne.s32.totalorder %s45, %s47
    %p54 = scmp.eq.s32.totalorder %s16, 3
    %p55 = por %p53, %p54
    %p56 = scmp.ne.s32.totalorder %s47, %s48
    %p57 = scmp.eq.s32.totalorder %s16, 0
    %p58 = por %p56, %p57
    %p59 = scmp.ne.s32.totalorder %s47, %s48
    %p60 = scmp.eq.s32.totalorder %s17, 3
    %p61 = por %p59, %p60
    %p63 = scmp.ne.s32.totalorder %s48, %s62
    %p64 = scmp.eq.s32.totalorder %s17, 0
    %p65 = por %p63, %p64
    %s66 = ssub.s32 %s11, %s18
    %p67 = scmp.eq.s32.totalorder %s66, 0
    %s69 = sadd.s32 %s68, 1
    %s70 = scalar_select %p67, %s68, %s69
    %p73 = pneg %p67
    %p74 = scmp.eq.s32.totalorder %s11, 3
    %p75 = por %p73, %p74
    %p76 = scmp.ne.s32.totalorder %s68, %s71
    %p77 = scmp.eq.s32.totalorder %s11, 0
    %p78 = por %p76, %p77
    %p79 = scmp.ne.s32.totalorder %s68, %s71
    %p80 = scmp.eq.s32.totalorder %s16, 3
    %p81 = por %p79, %p80
    %p82 = scmp.ne.s32.totalorder %s71, %s72
    %p83 = scmp.eq.s32.totalorder %s16, 0
    %p84 = por %p82, %p83
    %p85 = scmp.ne.s32.totalorder %s71, %s72
    %p86 = scmp.eq.s32.totalorder %s17, 3
    %p87 = por %p85, %p86
    %p89 = scmp.ne.s32.totalorder %s72, %s88
    %p90 = scmp.eq.s32.totalorder %s17, 0
    %p91 = por %p89, %p90
    %s93 = sadd.s32 %s92, 1
    %p96 = scmp.eq.s32.totalorder %s11, 3
    %p97 = scmp.ne.s32.totalorder %s92, %s94
    %p98 = scmp.eq.s32.totalorder %s11, 0
    %p99 = por %p97, %p98
    %p100 = scmp.ne.s32.totalorder %s92, %s94
    %p101 = scmp.eq.s32.totalorder %s16, 3
    %p102 = por %p100, %p101
    %p103 = scmp.ne.s32.totalorder %s94, %s95
    %p104 = scmp.eq.s32.totalorder %s16, 0
    %p105 = por %p103, %p104
    %p106 = scmp.ne.s32.totalorder %s94, %s95
    %p107 = scmp.eq.s32.totalorder %s17, 3
    %p108 = por %p106, %p107
    %p110 = scmp.ne.s32.totalorder %s95, %s109
    %p111 = scmp.eq.s32.totalorder %s17, 0
    %p112 = por %p110, %p111
    %s114 = sadd.s32 %s113, 1
    %p117 = scmp.eq.s32.totalorder %s11, 3
    %p118 = scmp.ne.s32.totalorder %s113, %s115
    %p119 = scmp.eq.s32.totalorder %s11, 0
    %p120 = por %p118, %p119
    %p121 = scmp.ne.s32.totalorder %s113, %s115
    %p122 = scmp.eq.s32.totalorder %s16, 3
    %p123 = por %p121, %p122
    %p124 = scmp.ne.s32.totalorder %s115, %s116
    %p125 = scmp.eq.s32.totalorder %s16, 0
    %p126 = por %p124, %p125
    %p127 = scmp.ne.s32.totalorder %s115, %s116
    %p128 = scmp.eq.s32.totalorder %s17, 3
    %p129 = por %p127, %p128
    %p131 = scmp.ne.s32.totalorder %s116, %s130
    %p132 = scmp.eq.s32.totalorder %s17, 0
    %p133 = por %p131, %p132
    %p134 = scmp.le.s32.totalorder 1, %s11
    %p135 = scmp.lt.s32.totalorder %s11, 5
    %p136 = pnand %p134, %p135
    %p137 = pneg %p136
    // Predicated region
    $region9: #{upblock2d_forward.2} parent=5 // pred_check
      _
    $region10: #{upblock2d_forward.2} parent=5 // pred_check_branch
      %139 = sbr.rel (%p136) target = $region12
    $region11: #{upblock2d_forward.2} parent=5 // pred_region
      %s140 = ssub.s32 %s11, 1
      // Predicated region
      $region13: #{upblock2d_forward.2} parent=11 // pred_check
        %p141 = pneg %p58
      $region14: #{upblock2d_forward.2} parent=11 // pred_check_branch
        %143 = sbr.rel (%p141) target = $region16
      $region15: #{upblock2d_forward.2} parent=11 // pred_region
        _
      $region16: #{upblock2d_forward.2} parent=11 // pred_fallthru
        _
    $region12: #{upblock2d_forward.2} parent=5 // pred_fallthru
      _
    %p144 = scmp.lt.s32.totalorder %s11, 4
    // Predicated region
    $region17: #{upblock2d_forward.2} parent=5 // pred_check
      %p145 = pneg %p144
    $region18: #{upblock2d_forward.2} parent=5 // pred_check_branch
      %147 = sbr.rel (%p145) target = $region20
    $region19: #{upblock2d_forward.2} parent=5 // pred_region
      // Predicated region
      $region21: #{upblock2d_forward.2} parent=19 // pred_check
        %p148 = pneg %p31
      $region22: #{upblock2d_forward.2} parent=19 // pred_check_branch
        %150 = sbr.rel (%p148) target = $region24
      $region23: #{upblock2d_forward.2} parent=19 // pred_region
        %s151 = smul.u32 64, %s11
        %p152 = scmp.lt.s32.totalorder %s151, 255
        %s153 = scalar_select %p152, %s151, 255
        %s154 = smul.addr %s153, 4
        %s155 = scalar_lea.vmem %s0, %s154
        %s156 = smul.u32 64, %s11
      $region24: #{upblock2d_forward.2} parent=19 // pred_fallthru
        _
    $region20: #{upblock2d_forward.2} parent=5 // pred_fallthru
      _
    %p157 = scmp.le.s32.totalorder 1, %s11
    %p158 = scmp.lt.s32.totalorder %s11, 5
    %p159 = pnand %p157, %p158
    %p160 = pneg %p159
    // Predicated region
    $region25: #{upblock2d_forward.2} parent=5 // pred_check
      _
    $region26: #{upblock2d_forward.2} parent=5 // pred_check_branch
      %162 = sbr.rel (%p159) target = $region28
    $region27: #{upblock2d_forward.2} parent=5 // pred_region
      %s163 = ssub.s32 %s11, 1
      %s164 = smul.u32 64, %s16
      %p165 = scmp.lt.s32.totalorder %s164, 255
      %s166 = scalar_select %p165, %s164, 255
      %s167 = smul.addr %s166, 4
      %s168 = scalar_lea.vmem %s0, %s167
      %p169 = pneg %p37
      %p170 = pneg %p34
      %p171 = pneg %p58
      %p172 = pneg %p55
      %p173 = pneg %p84
      %p174 = pneg %p81
      %s175 = smul.u32 64, %s16
      %p176 = scmp.lt.s32.totalorder %s175, 255
      %s177 = scalar_select %p176, %s175, 255
      %s178 = smul.addr %s177, 8
      %s179 = scalar_lea.vmem %s2, %s178
      %p180 = pneg %p105
      %p181 = pneg %p102
      %p182 = pneg %p126
      %p183 = pneg %p123
      %s184 = smul.u32 64, %s16
      %p185 = scmp.lt.s32.totalorder %s184, 255
      %s186 = scalar_select %p185, %s184, 255
      %s187 = smul.addr %s186, 4
      %s188 = scalar_lea.vmem %s0, %s187
      %s189 = smul.u32 64, %s16
      %s190 = smul.u32 64, %s16
      %p191 = scmp.lt.s32.totalorder %s190, 255
      %s192 = scalar_select %p191, %s190, 255
      %s193 = smul.addr %s192, 8
      %s194 = scalar_lea.vmem %s2, %s193
      %s195 = smul.u32 64, %s16
      %v197 = vld [vmem:[%s188] sm:$0xf]
      %v198 = vld [vmem:[%s188 + $0x4] sm:$0xf]
      %v199 = vld [vmem:[%s188 + $0x8] sm:$0xf]
      %v200 = vld [vmem:[%s188 + $0xc] sm:$0xf]
      %v201 = vld [vmem:[%s188 + $0x10] sm:$0xf]
      %v202 = vld [vmem:[%s188 + $0x14] sm:$0xf]
      %v203 = vld [vmem:[%s188 + $0x18] sm:$0xf]
      %v204 = vld [vmem:[%s188 + $0x1c] sm:$0xf]
      %v205 = vld [vmem:[%s188 + $0x20] sm:$0xf]
      %v206 = vld [vmem:[%s188 + $0x24] sm:$0xf]
      %v207 = vld [vmem:[%s188 + $0x28] sm:$0xf]
      %v208 = vld [vmem:[%s188 + $0x2c] sm:$0xf]
      %v209 = vld [vmem:[%s188 + $0x30] sm:$0xf]
      %v210 = vld [vmem:[%s188 + $0x34] sm:$0xf]
      %v211 = vld [vmem:[%s188 + $0x38] sm:$0xf]
      %v212 = vld [vmem:[%s188 + $0x3c] sm:$0xf]
      %v213 = vld [vmem:[%s188 + $0x40] sm:$0xf]
      %v214 = vld [vmem:[%s188 + $0x44] sm:$0xf]
      %v215 = vld [vmem:[%s188 + $0x48] sm:$0xf]
      %v216 = vld [vmem:[%s188 + $0x4c] sm:$0xf]
      %v217 = vld [vmem:[%s188 + $0x50] sm:$0xf]
      %v218 = vld [vmem:[%s188 + $0x54] sm:$0xf]
      %v219 = vld [vmem:[%s188 + $0x58] sm:$0xf]
      %v220 = vld [vmem:[%s188 + $0x5c] sm:$0xf]
      %v221 = vld [vmem:[%s188 + $0x60] sm:$0xf]
      %v222 = vld [vmem:[%s188 + $0x64] sm:$0xf]
      %v223 = vld [vmem:[%s188 + $0x68] sm:$0xf]
      %v224 = vld [vmem:[%s188 + $0x6c] sm:$0xf]
      %v225 = vld [vmem:[%s188 + $0x70] sm:$0xf]
      %v226 = vld [vmem:[%s188 + $0x74] sm:$0xf]
      %v227 = vld [vmem:[%s188 + $0x78] sm:$0xf]
      %v228 = vld [vmem:[%s188 + $0x7c] sm:$0xf]
      %v229 = vld [vmem:[%s188 + $0x80] sm:$0xf]
      %v230 = vld [vmem:[%s188 + $0x84] sm:$0xf]
      %v231 = vld [vmem:[%s188 + $0x88] sm:$0xf]
      %v232 = vld [vmem:[%s188 + $0x8c] sm:$0xf]
      %v233 = vld [vmem:[%s188 + $0x90] sm:$0xf]
      %v234 = vld [vmem:[%s188 + $0x94] sm:$0xf]
      %v235 = vld [vmem:[%s188 + $0x98] sm:$0xf]
      %v236 = vld [vmem:[%s188 + $0x9c] sm:$0xf]
      %v237 = vld [vmem:[%s188 + $0xa0] sm:$0xf]
      %v238 = vld [vmem:[%s188 + $0xa4] sm:$0xf]
      %v239 = vld [vmem:[%s188 + $0xa8] sm:$0xf]
      %v240 = vld [vmem:[%s188 + $0xac] sm:$0xf]
      %v241 = vld [vmem:[%s188 + $0xb0] sm:$0xf]
      %v242 = vld [vmem:[%s188 + $0xb4] sm:$0xf]
      %v243 = vld [vmem:[%s188 + $0xb8] sm:$0xf]
      %v244 = vld [vmem:[%s188 + $0xbc] sm:$0xf]
      %v245 = vld [vmem:[%s188 + $0xc0] sm:$0xf]
      %v246 = vld [vmem:[%s188 + $0xc4] sm:$0xf]
      %v247 = vld [vmem:[%s188 + $0xc8] sm:$0xf]
      %v248 = vld [vmem:[%s188 + $0xcc] sm:$0xf]
      %v249 = vld [vmem:[%s188 + $0xd0] sm:$0xf]
      %v250 = vld [vmem:[%s188 + $0xd4] sm:$0xf]
      %v251 = vld [vmem:[%s188 + $0xd8] sm:$0xf]
      %v252 = vld [vmem:[%s188 + $0xdc] sm:$0xf]
      %v253 = vld [vmem:[%s188 + $0xe0] sm:$0xf]
      %v254 = vld [vmem:[%s188 + $0xe4] sm:$0xf]
      %v255 = vld [vmem:[%s188 + $0xe8] sm:$0xf]
      %v256 = vld [vmem:[%s188 + $0xec] sm:$0xf]
      %v257 = vld [vmem:[%s188 + $0xf0] sm:$0xf]
      %v258 = vld [vmem:[%s188 + $0xf4] sm:$0xf]
      %v259 = vld [vmem:[%s188 + $0xf8] sm:$0xf]
      %v260 = vld [vmem:[%s188 + $0xfc] sm:$0xf]
      %v261 = vld [vmem:[%s1] sm:$0xf]
      %v262 = vld [vmem:[%s1 + $0x4] sm:$0xf]
      %v263 = vld [vmem:[%s1 + $0x8] sm:$0xf]
      %v264 = vld [vmem:[%s1 + $0xc] sm:$0xf]
      %v265 = vld [vmem:[%s1 + $0x10] sm:$0xf]
      %v266 = vld [vmem:[%s1 + $0x14] sm:$0xf]
      %v267 = vld [vmem:[%s1 + $0x18] sm:$0xf]
      %v268 = vld [vmem:[%s1 + $0x1c] sm:$0xf]
      %v269 = vld [vmem:[%s1 + $0x20] sm:$0xf]
      %v270 = vld [vmem:[%s1 + $0x24] sm:$0xf]
      %v271 = vld [vmem:[%s1 + $0x28] sm:$0xf]
      %v272 = vld [vmem:[%s1 + $0x2c] sm:$0xf]
      %v273 = vld [vmem:[%s1 + $0x30] sm:$0xf]
      %v274 = vld [vmem:[%s1 + $0x34] sm:$0xf]
      %v275 = vld [vmem:[%s1 + $0x38] sm:$0xf]
      %v276 = vld [vmem:[%s1 + $0x3c] sm:$0xf]
      %v341 = vunpack.c.l.b16 %v197
      %v342 = vunpack.c.l.b16 %v198
      %v343 = vunpack.c.l.b16 %v199
      %v344 = vunpack.c.l.b16 %v200
      %v345 = vunpack.c.l.b16 %v201
      %v346 = vunpack.c.l.b16 %v202
      %v347 = vunpack.c.l.b16 %v203
      %v348 = vunpack.c.l.b16 %v204
      %v349 = vunpack.c.l.b16 %v205
      %v350 = vunpack.c.l.b16 %v206
      %v351 = vunpack.c.l.b16 %v207
      %v352 = vunpack.c.l.b16 %v208
      %v353 = vunpack.c.l.b16 %v209
      %v354 = vunpack.c.l.b16 %v210
      %v355 = vunpack.c.l.b16 %v211
      %v356 = vunpack.c.l.b16 %v212
      %v357 = vunpack.c.l.b16 %v213
      %v358 = vunpack.c.l.b16 %v214
      %v359 = vunpack.c.l.b16 %v215
      %v360 = vunpack.c.l.b16 %v216
      %v361 = vunpack.c.l.b16 %v217
      %v362 = vunpack.c.l.b16 %v218
      %v363 = vunpack.c.l.b16 %v219
      %v364 = vunpack.c.l.b16 %v220
      %v365 = vunpack.c.l.b16 %v221
      %v366 = vunpack.c.l.b16 %v222
      %v367 = vunpack.c.l.b16 %v223
      %v368 = vunpack.c.l.b16 %v224
      %v369 = vunpack.c.l.b16 %v225
      %v370 = vunpack.c.l.b16 %v226
      %v371 = vunpack.c.l.b16 %v227
      %v372 = vunpack.c.l.b16 %v228
      %v373 = vunpack.c.l.b16 %v229
      %v374 = vunpack.c.l.b16 %v230
      %v375 = vunpack.c.l.b16 %v231
      %v376 = vunpack.c.l.b16 %v232
      %v377 = vunpack.c.l.b16 %v233
      %v378 = vunpack.c.l.b16 %v234
      %v379 = vunpack.c.l.b16 %v235
      %v380 = vunpack.c.l.b16 %v236
      %v381 = vunpack.c.l.b16 %v237
      %v382 = vunpack.c.l.b16 %v238
      %v383 = vunpack.c.l.b16 %v239
      %v384 = vunpack.c.l.b16 %v240
      %v385 = vunpack.c.l.b16 %v241
      %v386 = vunpack.c.l.b16 %v242
      %v387 = vunpack.c.l.b16 %v243
      %v388 = vunpack.c.l.b16 %v244
      %v389 = vunpack.c.l.b16 %v245
      %v390 = vunpack.c.l.b16 %v246
      %v391 = vunpack.c.l.b16 %v247
      %v392 = vunpack.c.l.b16 %v248
      %v393 = vunpack.c.l.b16 %v249
      %v394 = vunpack.c.l.b16 %v250
      %v395 = vunpack.c.l.b16 %v251
      %v396 = vunpack.c.l.b16 %v252
      %v397 = vunpack.c.l.b16 %v253
      %v398 = vunpack.c.l.b16 %v254
      %v399 = vunpack.c.l.b16 %v255
      %v400 = vunpack.c.l.b16 %v256
      %v401 = vunpack.c.l.b16 %v257
      %v402 = vunpack.c.l.b16 %v258
      %v403 = vunpack.c.l.b16 %v259
      %v404 = vunpack.c.l.b16 %v260
      %v405 = vpack.c.b16 %v342, %v341
      %v406 = vpack.c.b16 %v344, %v343
      %v407 = vpack.c.b16 %v346, %v345
      %v408 = vpack.c.b16 %v348, %v347
      %v409 = vpack.c.b16 %v350, %v349
      %v410 = vpack.c.b16 %v352, %v351
      %v411 = vpack.c.b16 %v354, %v353
      %v412 = vpack.c.b16 %v356, %v355
      %v413 = vpack.c.b16 %v358, %v357
      %v414 = vpack.c.b16 %v360, %v359
      %v415 = vpack.c.b16 %v362, %v361
      %v416 = vpack.c.b16 %v364, %v363
      %v417 = vpack.c.b16 %v366, %v365
      %v418 = vpack.c.b16 %v368, %v367
      %v419 = vpack.c.b16 %v370, %v369
      %v420 = vpack.c.b16 %v372, %v371
      %v421 = vpack.c.b16 %v374, %v373
      %v422 = vpack.c.b16 %v376, %v375
      %v423 = vpack.c.b16 %v378, %v377
      %v424 = vpack.c.b16 %v380, %v379
      %v425 = vpack.c.b16 %v382, %v381
      %v426 = vpack.c.b16 %v384, %v383
      %v427 = vpack.c.b16 %v386, %v385
      %v428 = vpack.c.b16 %v388, %v387
      %v429 = vpack.c.b16 %v390, %v389
      %v430 = vpack.c.b16 %v392, %v391
      %v431 = vpack.c.b16 %v394, %v393
      %v432 = vpack.c.b16 %v396, %v395
      %v433 = vpack.c.b16 %v398, %v397
      %v434 = vpack.c.b16 %v400, %v399
      %v435 = vpack.c.b16 %v402, %v401
      %v436 = vpack.c.b16 %v404, %v403
      %v485 = vunpack.c.l.b16 %v261
      %v486 = vunpack.c.l.b16 %v262
      %v487 = vunpack.c.l.b16 %v263
      %v488 = vunpack.c.l.b16 %v264
      %v489 = vunpack.c.l.b16 %v265
      %v490 = vunpack.c.l.b16 %v266
      %v491 = vunpack.c.l.b16 %v267
      %v492 = vunpack.c.l.b16 %v268
      %v493 = vunpack.c.l.b16 %v269
      %v494 = vunpack.c.l.b16 %v270
      %v495 = vunpack.c.l.b16 %v271
      %v496 = vunpack.c.l.b16 %v272
      %v497 = vunpack.c.l.b16 %v273
      %v498 = vunpack.c.l.b16 %v274
      %v499 = vunpack.c.l.b16 %v275
      %v500 = vunpack.c.l.b16 %v276
      %v501 = vpack.c.b16 %v486, %v485
      %v502 = vpack.c.b16 %v488, %v487
      %v503 = vpack.c.b16 %v490, %v489
      %v504 = vpack.c.b16 %v492, %v491
      %v505 = vpack.c.b16 %v494, %v493
      %v506 = vpack.c.b16 %v496, %v495
      %v507 = vpack.c.b16 %v498, %v497
      %v508 = vpack.c.b16 %v500, %v499
      %517 = vmatprep.subr.bf16.mxu0 0
      %518 = vmatpush1.bf16.msra.mxu0 %v508
      %519 = vmatprep.subr.bf16.mxu0 0
      %520 = vmatpush1.bf16.msra.mxu0 %v507
      %521 = vmatprep.subr.bf16.mxu0 0
      %522 = vmatpush1.bf16.msra.mxu0 %v506
      %523 = vmatprep.subr.bf16.mxu0 0
      %524 = vmatpush1.bf16.msra.mxu0 %v505
      %525 = vmatprep.subr.bf16.mxu0 0
      %526 = vmatpush1.bf16.msra.mxu0 %v504
      %527 = vmatprep.subr.bf16.mxu0 0
      %528 = vmatpush1.bf16.msra.mxu0 %v503
      %529 = vmatprep.subr.bf16.mxu0 0
      %530 = vmatpush1.bf16.msra.mxu0 %v502
      %531 = vmatprep.subr.bf16.mxu0 0
      %532 = vmatpush1.bf16.msra.mxu0 %v501
      %533 = vmatprep.subr.bf16.mxu0 0
      %534 = vmatpush2.bf16.msra.mxu0 0
      %535 = vmatprep.subr.bf16.mxu0 0
      %536 = vmatpush2.bf16.msra.mxu0 0
      %537 = vmatprep.subr.bf16.mxu0 0
      %538 = vmatpush2.bf16.msra.mxu0 0
      %539 = vmatprep.subr.bf16.mxu0 0
      %540 = vmatpush2.bf16.msra.mxu0 0
      %541 = vmatprep.subr.bf16.mxu0 0
      %542 = vmatpush2.bf16.msra.mxu0 0
      %543 = vmatprep.subr.bf16.mxu0 0
      %544 = vmatpush2.bf16.msra.mxu0 0
      %545 = vmatprep.subr.bf16.mxu0 0
      %546 = vmatpush2.bf16.msra.mxu0 0
      %547 = vmatprep.subr.bf16.mxu0 0
      %548 = vmatpush2.bf16.msra.mxu0 0
      %549 = vmatprep.mubr.bf16.mxu0 0
      %550 = vmatmul.mubr.bf16.gmra.mxu0 %v405
      %v551 = vpop.f32.mrf.mxu0
      %v552 = vadd.f32 0.0, %v551
      %v553 = vpop.f32.mrf.mxu0
      %v554 = vpop.f32.mrf.mxu0
      %v555 = vadd.f32 0.0, %v554
      %v556 = vpop.f32.mrf.mxu0
      %557 = vmatprep.mubr.bf16.mxu0 0
      %558 = vmatmul.mubr.bf16.gmra.mxu0 %v406
      %v559 = vpop.f32.mrf.mxu0
      %v560 = vadd.f32 0.0, %v559
      %v561 = vpop.f32.mrf.mxu0
      %v562 = vpop.f32.mrf.mxu0
      %v563 = vadd.f32 0.0, %v562
      %v564 = vpop.f32.mrf.mxu0
      %565 = vmatprep.mubr.bf16.mxu0 0
      %566 = vmatmul.mubr.bf16.gmra.mxu0 %v407
      %v567 = vpop.f32.mrf.mxu0
      %v568 = vadd.f32 0.0, %v567
      %v569 = vpop.f32.mrf.mxu0
      %v570 = vpop.f32.mrf.mxu0
      %v571 = vadd.f32 0.0, %v570
      %v572 = vpop.f32.mrf.mxu0
      %573 = vmatprep.mubr.bf16.mxu0 0
      %574 = vmatmul.mubr.bf16.gmra.mxu0 %v408
      %v575 = vpop.f32.mrf.mxu0
      %v576 = vadd.f32 0.0, %v575
      %v577 = vpop.f32.mrf.mxu0
      %v578 = vpop.f32.mrf.mxu0
      %v579 = vadd.f32 0.0, %v578
      %v580 = vpop.f32.mrf.mxu0
      %581 = vmatprep.mubr.bf16.mxu0 0
      %582 = vmatmul.mubr.bf16.gmra.mxu0 %v409
      %v583 = vpop.f32.mrf.mxu0
      %v584 = vadd.f32 0.0, %v583
      %v585 = vpop.f32.mrf.mxu0
      %v586 = vpop.f32.mrf.mxu0
      %v587 = vadd.f32 0.0, %v586
      %v588 = vpop.f32.mrf.mxu0
      %589 = vmatprep.mubr.bf16.mxu0 0
      %590 = vmatmul.mubr.bf16.gmra.mxu0 %v410
      %v591 = vpop.f32.mrf.mxu0
      %v592 = vadd.f32 0.0, %v591
      %v593 = vpop.f32.mrf.mxu0
      %v594 = vpop.f32.mrf.mxu0
      %v595 = vadd.f32 0.0, %v594
      %v596 = vpop.f32.mrf.mxu0
      %597 = vmatprep.mubr.bf16.mxu0 0
      %598 = vmatmul.mubr.bf16.gmra.mxu0 %v411
      %v599 = vpop.f32.mrf.mxu0
      %v600 = vadd.f32 0.0, %v599
      %v601 = vpop.f32.mrf.mxu0
      %v602 = vpop.f32.mrf.mxu0
      %v603 = vadd.f32 0.0, %v602
      %v604 = vpop.f32.mrf.mxu0
      %605 = vmatprep.mubr.bf16.mxu0 0
      %606 = vmatmul.mubr.bf16.gmra.mxu0 %v412
      %v607 = vpop.f32.mrf.mxu0
      %v608 = vadd.f32 0.0, %v607
      %v609 = vpop.f32.mrf.mxu0
      %v610 = vpop.f32.mrf.mxu0
      %v611 = vadd.f32 0.0, %v610
      %v612 = vpop.f32.mrf.mxu0
      %613 = vmatprep.mubr.bf16.mxu0 0
      %614 = vmatmul.mubr.bf16.gmra.mxu0 %v413
      %v615 = vpop.f32.mrf.mxu0
      %v616 = vadd.f32 0.0, %v615
      %v617 = vpop.f32.mrf.mxu0
      %v618 = vpop.f32.mrf.mxu0
      %v619 = vadd.f32 0.0, %v618
      %v620 = vpop.f32.mrf.mxu0
      %621 = vmatprep.mubr.bf16.mxu0 0
      %622 = vmatmul.mubr.bf16.gmra.mxu0 %v414
      %v623 = vpop.f32.mrf.mxu0
      %v624 = vadd.f32 0.0, %v623
      %v625 = vpop.f32.mrf.mxu0
      %v626 = vpop.f32.mrf.mxu0
      %v627 = vadd.f32 0.0, %v626
      %v628 = vpop.f32.mrf.mxu0
      %629 = vmatprep.mubr.bf16.mxu0 0
      %630 = vmatmul.mubr.bf16.gmra.mxu0 %v415
      %v631 = vpop.f32.mrf.mxu0
      %v632 = vadd.f32 0.0, %v631
      %v633 = vpop.f32.mrf.mxu0
      %v634 = vpop.f32.mrf.mxu0
      %v635 = vadd.f32 0.0, %v634
      %v636 = vpop.f32.mrf.mxu0
      %637 = vmatprep.mubr.bf16.mxu0 0
      %638 = vmatmul.mubr.bf16.gmra.mxu0 %v416
      %v639 = vpop.f32.mrf.mxu0
      %v640 = vadd.f32 0.0, %v639
      %v641 = vpop.f32.mrf.mxu0
      %v642 = vpop.f32.mrf.mxu0
      %v643 = vadd.f32 0.0, %v642
      %v644 = vpop.f32.mrf.mxu0
      %645 = vmatprep.mubr.bf16.mxu0 0
      %646 = vmatmul.mubr.bf16.gmra.mxu0 %v417
      %v647 = vpop.f32.mrf.mxu0
      %v648 = vadd.f32 0.0, %v647
      %v649 = vpop.f32.mrf.mxu0
      %v650 = vpop.f32.mrf.mxu0
      %v651 = vadd.f32 0.0, %v650
      %v652 = vpop.f32.mrf.mxu0
      %653 = vmatprep.mubr.bf16.mxu0 0
      %654 = vmatmul.mubr.bf16.gmra.mxu0 %v418
      %v655 = vpop.f32.mrf.mxu0
      %v656 = vadd.f32 0.0, %v655
      %v657 = vpop.f32.mrf.mxu0
      %v658 = vpop.f32.mrf.mxu0
      %v659 = vadd.f32 0.0, %v658
      %v660 = vpop.f32.mrf.mxu0
      %661 = vmatprep.mubr.bf16.mxu0 0
      %662 = vmatmul.mubr.bf16.gmra.mxu0 %v419
      %v663 = vpop.f32.mrf.mxu0
      %v664 = vadd.f32 0.0, %v663
      %v665 = vpop.f32.mrf.mxu0
      %v666 = vpop.f32.mrf.mxu0
      %v667 = vadd.f32 0.0, %v666
      %v668 = vpop.f32.mrf.mxu0
      %669 = vmatprep.mubr.bf16.mxu0 0
      %670 = vmatmul.mubr.bf16.gmra.mxu0 %v420
      %v671 = vpop.f32.mrf.mxu0
      %v672 = vadd.f32 0.0, %v671
      %v673 = vpop.f32.mrf.mxu0
      %v674 = vpop.f32.mrf.mxu0
      %v675 = vadd.f32 0.0, %v674
      %v676 = vpop.f32.mrf.mxu0
      %677 = vmatprep.mubr.bf16.mxu0 0
      %678 = vmatmul.mubr.bf16.gmra.mxu0 %v421
      %v679 = vpop.f32.mrf.mxu0
      %v680 = vadd.f32 0.0, %v679
      %v681 = vpop.f32.mrf.mxu0
      %v682 = vpop.f32.mrf.mxu0
      %v683 = vadd.f32 0.0, %v682
      %v684 = vpop.f32.mrf.mxu0
      %685 = vmatprep.mubr.bf16.mxu0 0
      %686 = vmatmul.mubr.bf16.gmra.mxu0 %v422
      %v687 = vpop.f32.mrf.mxu0
      %v688 = vadd.f32 0.0, %v687
      %v689 = vpop.f32.mrf.mxu0
      %v690 = vpop.f32.mrf.mxu0
      %v691 = vadd.f32 0.0, %v690
      %v692 = vpop.f32.mrf.mxu0
      %693 = vmatprep.mubr.bf16.mxu0 0
      %694 = vmatmul.mubr.bf16.gmra.mxu0 %v423
      %v695 = vpop.f32.mrf.mxu0
      %v696 = vadd.f32 0.0, %v695
      %v697 = vpop.f32.mrf.mxu0
      %v698 = vpop.f32.mrf.mxu0
      %v699 = vadd.f32 0.0, %v698
      %v700 = vpop.f32.mrf.mxu0
      %701 = vmatprep.mubr.bf16.mxu0 0
      %702 = vmatmul.mubr.bf16.gmra.mxu0 %v424
      %v703 = vpop.f32.mrf.mxu0
      %v704 = vadd.f32 0.0, %v703
      %v705 = vpop.f32.mrf.mxu0
      %v706 = vpop.f32.mrf.mxu0
      %v707 = vadd.f32 0.0, %v706
      %v708 = vpop.f32.mrf.mxu0
      %709 = vmatprep.mubr.bf16.mxu0 0
      %710 = vmatmul.mubr.bf16.gmra.mxu0 %v425
      %v711 = vpop.f32.mrf.mxu0
      %v712 = vadd.f32 0.0, %v711
      %v713 = vpop.f32.mrf.mxu0
      %v714 = vpop.f32.mrf.mxu0
      %v715 = vadd.f32 0.0, %v714
      %v716 = vpop.f32.mrf.mxu0
      %717 = vmatprep.mubr.bf16.mxu0 0
      %718 = vmatmul.mubr.bf16.gmra.mxu0 %v426
      %v719 = vpop.f32.mrf.mxu0
      %v720 = vadd.f32 0.0, %v719
      %v721 = vpop.f32.mrf.mxu0
      %v722 = vpop.f32.mrf.mxu0
      %v723 = vadd.f32 0.0, %v722
      %v724 = vpop.f32.mrf.mxu0
      %725 = vmatprep.mubr.bf16.mxu0 0
      %726 = vmatmul.mubr.bf16.gmra.mxu0 %v427
      %v727 = vpop.f32.mrf.mxu0
      %v728 = vadd.f32 0.0, %v727
      %v729 = vpop.f32.mrf.mxu0
      %v730 = vpop.f32.mrf.mxu0
      %v731 = vadd.f32 0.0, %v730
      %v732 = vpop.f32.mrf.mxu0
      %733 = vmatprep.mubr.bf16.mxu0 0
      %734 = vmatmul.mubr.bf16.gmra.mxu0 %v428
      %v735 = vpop.f32.mrf.mxu0
      %v736 = vadd.f32 0.0, %v735
      %v737 = vpop.f32.mrf.mxu0
      %v738 = vpop.f32.mrf.mxu0
      %v739 = vadd.f32 0.0, %v738
      %v740 = vpop.f32.mrf.mxu0
      %741 = vmatprep.mubr.bf16.mxu0 0
      %742 = vmatmul.mubr.bf16.gmra.mxu0 %v429
      %v743 = vpop.f32.mrf.mxu0
      %v744 = vadd.f32 0.0, %v743
      %v745 = vpop.f32.mrf.mxu0
      %v746 = vpop.f32.mrf.mxu0
      %v747 = vadd.f32 0.0, %v746
      %v748 = vpop.f32.mrf.mxu0
      %749 = vmatprep.mubr.bf16.mxu0 0
      %750 = vmatmul.mubr.bf16.gmra.mxu0 %v430
      %v751 = vpop.f32.mrf.mxu0
      %v752 = vadd.f32 0.0, %v751
      %v753 = vpop.f32.mrf.mxu0
      %v754 = vpop.f32.mrf.mxu0
      %v755 = vadd.f32 0.0, %v754
      %v756 = vpop.f32.mrf.mxu0
      %757 = vmatprep.mubr.bf16.mxu0 0
      %758 = vmatmul.mubr.bf16.gmra.mxu0 %v431
      %v759 = vpop.f32.mrf.mxu0
      %v760 = vadd.f32 0.0, %v759
      %v761 = vpop.f32.mrf.mxu0
      %v762 = vpop.f32.mrf.mxu0
      %v763 = vadd.f32 0.0, %v762
      %v764 = vpop.f32.mrf.mxu0
      %765 = vmatprep.mubr.bf16.mxu0 0
      %766 = vmatmul.mubr.bf16.gmra.mxu0 %v432
      %v767 = vpop.f32.mrf.mxu0
      %v768 = vadd.f32 0.0, %v767
      %v769 = vpop.f32.mrf.mxu0
      %v770 = vpop.f32.mrf.mxu0
      %v771 = vadd.f32 0.0, %v770
      %v772 = vpop.f32.mrf.mxu0
      %773 = vmatprep.mubr.bf16.mxu0 0
      %774 = vmatmul.mubr.bf16.gmra.mxu0 %v433
      %v775 = vpop.f32.mrf.mxu0
      %v776 = vadd.f32 0.0, %v775
      %v777 = vpop.f32.mrf.mxu0
      %v778 = vpop.f32.mrf.mxu0
      %v779 = vadd.f32 0.0, %v778
      %v780 = vpop.f32.mrf.mxu0
      %781 = vmatprep.mubr.bf16.mxu0 0
      %782 = vmatmul.mubr.bf16.gmra.mxu0 %v434
      %v783 = vpop.f32.mrf.mxu0
      %v784 = vadd.f32 0.0, %v783
      %v785 = vpop.f32.mrf.mxu0
      %v786 = vpop.f32.mrf.mxu0
      %v787 = vadd.f32 0.0, %v786
      %v788 = vpop.f32.mrf.mxu0
      %789 = vmatprep.mubr.bf16.mxu0 0
      %790 = vmatmul.mubr.bf16.gmra.mxu0 %v435
      %v791 = vpop.f32.mrf.mxu0
      %v792 = vadd.f32 0.0, %v791
      %v793 = vpop.f32.mrf.mxu0
      %v794 = vpop.f32.mrf.mxu0
      %v795 = vadd.f32 0.0, %v794
      %v796 = vpop.f32.mrf.mxu0
      %797 = vmatprep.mubr.bf16.mxu0 0
      %798 = vmatmul.mubr.bf16.gmra.mxu0 %v436
      %v799 = vpop.f32.mrf.mxu0
      %v800 = vadd.f32 0.0, %v799
      %v801 = vpop.f32.mrf.mxu0
      %v802 = vpop.f32.mrf.mxu0
      %v803 = vadd.f32 0.0, %v802
      %v804 = vpop.f32.mrf.mxu0
      %805 = vdwg.mxu0
      %806 = vst [vmem:[%s194] sm:$0xff] %v552
      %807 = vst [vmem:[%s194 + $0x8] sm:$0xff] %v555
      %808 = vst [vmem:[%s194 + $0x10] sm:$0xff] %v560
      %809 = vst [vmem:[%s194 + $0x18] sm:$0xff] %v563
      %810 = vst [vmem:[%s194 + $0x20] sm:$0xff] %v568
      %811 = vst [vmem:[%s194 + $0x28] sm:$0xff] %v571
      %812 = vst [vmem:[%s194 + $0x30] sm:$0xff] %v576
      %813 = vst [vmem:[%s194 + $0x38] sm:$0xff] %v579
      %814 = vst [vmem:[%s194 + $0x40] sm:$0xff] %v584
      %815 = vst [vmem:[%s194 + $0x48] sm:$0xff] %v587
      %816 = vst [vmem:[%s194 + $0x50] sm:$0xff] %v592
      %817 = vst [vmem:[%s194 + $0x58] sm:$0xff] %v595
      %818 = vst [vmem:[%s194 + $0x60] sm:$0xff] %v600
      %819 = vst [vmem:[%s194 + $0x68] sm:$0xff] %v603
      %820 = vst [vmem:[%s194 + $0x70] sm:$0xff] %v608
      %821 = vst [vmem:[%s194 + $0x78] sm:$0xff] %v611
      %822 = vst [vmem:[%s194 + $0x80] sm:$0xff] %v616
      %823 = vst [vmem:[%s194 + $0x88] sm:$0xff] %v619
      %824 = vst [vmem:[%s194 + $0x90] sm:$0xff] %v624
      %825 = vst [vmem:[%s194 + $0x98] sm:$0xff] %v627
      %826 = vst [vmem:[%s194 + $0xa0] sm:$0xff] %v632
      %827 = vst [vmem:[%s194 + $0xa8] sm:$0xff] %v635
      %828 = vst [vmem:[%s194 + $0xb0] sm:$0xff] %v640
      %829 = vst [vmem:[%s194 + $0xb8] sm:$0xff] %v643
      %830 = vst [vmem:[%s194 + $0xc0] sm:$0xff] %v648
      %831 = vst [vmem:[%s194 + $0xc8] sm:$0xff] %v651
      %832 = vst [vmem:[%s194 + $0xd0] sm:$0xff] %v656
      %833 = vst [vmem:[%s194 + $0xd8] sm:$0xff] %v659
      %834 = vst [vmem:[%s194 + $0xe0] sm:$0xff] %v664
      %835 = vst [vmem:[%s194 + $0xe8] sm:$0xff] %v667
      %836 = vst [vmem:[%s194 + $0xf0] sm:$0xff] %v672
      %837 = vst [vmem:[%s194 + $0xf8] sm:$0xff] %v675
      %838 = vst [vmem:[%s194 + $0x100] sm:$0xff] %v680
      %839 = vst [vmem:[%s194 + $0x108] sm:$0xff] %v683
      %840 = vst [vmem:[%s194 + $0x110] sm:$0xff] %v688
      %841 = vst [vmem:[%s194 + $0x118] sm:$0xff] %v691
      %842 = vst [vmem:[%s194 + $0x120] sm:$0xff] %v696
      %843 = vst [vmem:[%s194 + $0x128] sm:$0xff] %v699
      %844 = vst [vmem:[%s194 + $0x130] sm:$0xff] %v704
      %845 = vst [vmem:[%s194 + $0x138] sm:$0xff] %v707
      %846 = vst [vmem:[%s194 + $0x140] sm:$0xff] %v712
      %847 = vst [vmem:[%s194 + $0x148] sm:$0xff] %v715
      %848 = vst [vmem:[%s194 + $0x150] sm:$0xff] %v720
      %849 = vst [vmem:[%s194 + $0x158] sm:$0xff] %v723
      %850 = vst [vmem:[%s194 + $0x160] sm:$0xff] %v728
      %851 = vst [vmem:[%s194 + $0x168] sm:$0xff] %v731
      %852 = vst [vmem:[%s194 + $0x170] sm:$0xff] %v736
      %853 = vst [vmem:[%s194 + $0x178] sm:$0xff] %v739
      %854 = vst [vmem:[%s194 + $0x180] sm:$0xff] %v744
      %855 = vst [vmem:[%s194 + $0x188] sm:$0xff] %v747
      %856 = vst [vmem:[%s194 + $0x190] sm:$0xff] %v752
      %857 = vst [vmem:[%s194 + $0x198] sm:$0xff] %v755
      %858 = vst [vmem:[%s194 + $0x1a0] sm:$0xff] %v760
      %859 = vst [vmem:[%s194 + $0x1a8] sm:$0xff] %v763
      %860 = vst [vmem:[%s194 + $0x1b0] sm:$0xff] %v768
      %861 = vst [vmem:[%s194 + $0x1b8] sm:$0xff] %v771
      %862 = vst [vmem:[%s194 + $0x1c0] sm:$0xff] %v776
      %863 = vst [vmem:[%s194 + $0x1c8] sm:$0xff] %v779
      %864 = vst [vmem:[%s194 + $0x1d0] sm:$0xff] %v784
      %865 = vst [vmem:[%s194 + $0x1d8] sm:$0xff] %v787
      %866 = vst [vmem:[%s194 + $0x1e0] sm:$0xff] %v792
      %867 = vst [vmem:[%s194 + $0x1e8] sm:$0xff] %v795
      %868 = vst [vmem:[%s194 + $0x1f0] sm:$0xff] %v800
      %869 = vst [vmem:[%s194 + $0x1f8] sm:$0xff] %v803
      %p870 = scmp.eq.s32.totalorder %s16, 0
      // Predicated region
      $region29: #{upblock2d_forward.2} parent=27 // pred_check
        %p871 = pneg %p870
      $region30: #{upblock2d_forward.2} parent=27 // pred_check_branch
        %873 = sbr.rel (%p871) target = $region32
      $region31: #{upblock2d_forward.2} parent=27 // pred_region
        %874 = vst [vmem:[%s3] sm:$0x1] 0.0
        %875 = vst [vmem:[%s4] sm:$0x1] 0.0
      $region32: #{upblock2d_forward.2} parent=27 // pred_fallthru
        _
      %v876 = vld [vmem:[%s194] sm:$0xff]
      %v877 = vld [vmem:[%s194 + $0x8] sm:$0xff]
      %v878 = vld [vmem:[%s194 + $0x10] sm:$0xff]
      %v879 = vld [vmem:[%s194 + $0x18] sm:$0xff]
      %v880 = vld [vmem:[%s194 + $0x20] sm:$0xff]
      %v881 = vld [vmem:[%s194 + $0x28] sm:$0xff]
      %v882 = vld [vmem:[%s194 + $0x30] sm:$0xff]
      %v883 = vld [vmem:[%s194 + $0x38] sm:$0xff]
      %v884 = vld [vmem:[%s194 + $0x40] sm:$0xff]
      %v885 = vld [vmem:[%s194 + $0x48] sm:$0xff]
      %v886 = vld [vmem:[%s194 + $0x50] sm:$0xff]
      %v887 = vld [vmem:[%s194 + $0x58] sm:$0xff]
      %v888 = vld [vmem:[%s194 + $0x60] sm:$0xff]
      %v889 = vld [vmem:[%s194 + $0x68] sm:$0xff]
      %v890 = vld [vmem:[%s194 + $0x70] sm:$0xff]
      %v891 = vld [vmem:[%s194 + $0x78] sm:$0xff]
      %v892 = vld [vmem:[%s194 + $0x80] sm:$0xff]
      %v893 = vld [vmem:[%s194 + $0x88] sm:$0xff]
      %v894 = vld [vmem:[%s194 + $0x90] sm:$0xff]
      %v895 = vld [vmem:[%s194 + $0x98] sm:$0xff]
      %v896 = vld [vmem:[%s194 + $0xa0] sm:$0xff]
      %v897 = vld [vmem:[%s194 + $0xa8] sm:$0xff]
      %v898 = vld [vmem:[%s194 + $0xb0] sm:$0xff]
      %v899 = vld [vmem:[%s194 + $0xb8] sm:$0xff]
      %v900 = vld [vmem:[%s194 + $0xc0] sm:$0xff]
      %v901 = vld [vmem:[%s194 + $0xc8] sm:$0xff]
      %v902 = vld [vmem:[%s194 + $0xd0] sm:$0xff]
      %v903 = vld [vmem:[%s194 + $0xd8] sm:$0xff]
      %v904 = vld [vmem:[%s194 + $0xe0] sm:$0xff]
      %v905 = vld [vmem:[%s194 + $0xe8] sm:$0xff]
      %v906 = vld [vmem:[%s194 + $0xf0] sm:$0xff]
      %v907 = vld [vmem:[%s194 + $0xf8] sm:$0xff]
      %v908 = vld [vmem:[%s194 + $0x100] sm:$0xff]
      %v909 = vld [vmem:[%s194 + $0x108] sm:$0xff]
      %v910 = vld [vmem:[%s194 + $0x110] sm:$0xff]
      %v911 = vld [vmem:[%s194 + $0x118] sm:$0xff]
      %v912 = vld [vmem:[%s194 + $0x120] sm:$0xff]
      %v913 = vld [vmem:[%s194 + $0x128] sm:$0xff]
      %v914 = vld [vmem:[%s194 + $0x130] sm:$0xff]
      %v915 = vld [vmem:[%s194 + $0x138] sm:$0xff]
      %v916 = vld [vmem:[%s194 + $0x140] sm:$0xff]
      %v917 = vld [vmem:[%s194 + $0x148] sm:$0xff]
      %v918 = vld [vmem:[%s194 + $0x150] sm:$0xff]
      %v919 = vld [vmem:[%s194 + $0x158] sm:$0xff]
      %v920 = vld [vmem:[%s194 + $0x160] sm:$0xff]
      %v921 = vld [vmem:[%s194 + $0x168] sm:$0xff]
      %v922 = vld [vmem:[%s194 + $0x170] sm:$0xff]
      %v923 = vld [vmem:[%s194 + $0x178] sm:$0xff]
      %v924 = vld [vmem:[%s194 + $0x180] sm:$0xff]
      %v925 = vld [vmem:[%s194 + $0x188] sm:$0xff]
      %v926 = vld [vmem:[%s194 + $0x190] sm:$0xff]
      %v927 = vld [vmem:[%s194 + $0x198] sm:$0xff]
      %v928 = vld [vmem:[%s194 + $0x1a0] sm:$0xff]
      %v929 = vld [vmem:[%s194 + $0x1a8] sm:$0xff]
      %v930 = vld [vmem:[%s194 + $0x1b0] sm:$0xff]
      %v931 = vld [vmem:[%s194 + $0x1b8] sm:$0xff]
      %v932 = vld [vmem:[%s194 + $0x1c0] sm:$0xff]
      %v933 = vld [vmem:[%s194 + $0x1c8] sm:$0xff]
      %v934 = vld [vmem:[%s194 + $0x1d0] sm:$0xff]
      %v935 = vld [vmem:[%s194 + $0x1d8] sm:$0xff]
      %v936 = vld [vmem:[%s194 + $0x1e0] sm:$0xff]
      %v937 = vld [vmem:[%s194 + $0x1e8] sm:$0xff]
      %v938 = vld [vmem:[%s194 + $0x1f0] sm:$0xff]
      %v939 = vld [vmem:[%s194 + $0x1f8] sm:$0xff]
      %v940 = vld [vmem:[%s3] sm:$0x1]
      %v941 = vadd.f32 %v876, %v877
      %v942 = vadd.f32 %v941, %v878
      %v943 = vadd.f32 %v942, %v879
      %v944 = vadd.f32 %v943, %v880
      %v945 = vadd.f32 %v944, %v881
      %v946 = vadd.f32 %v945, %v882
      %v947 = vadd.f32 %v946, %v883
      %v948 = vadd.f32 %v947, %v884
      %v949 = vadd.f32 %v948, %v885
      %v950 = vadd.f32 %v949, %v886
      %v951 = vadd.f32 %v950, %v887
      %v952 = vadd.f32 %v951, %v888
      %v953 = vadd.f32 %v952, %v889
      %v954 = vadd.f32 %v953, %v890
      %v955 = vadd.f32 %v954, %v891
      %v956 = vadd.f32 %v955, %v892
      %v957 = vadd.f32 %v956, %v893
      %v958 = vadd.f32 %v957, %v894
      %v959 = vadd.f32 %v958, %v895
      %v960 = vadd.f32 %v959, %v896
      %v961 = vadd.f32 %v960, %v897
      %v962 = vadd.f32 %v961, %v898
      %v963 = vadd.f32 %v962, %v899
      %v964 = vadd.f32 %v963, %v900
      %v965 = vadd.f32 %v964, %v901
      %v966 = vadd.f32 %v965, %v902
      %v967 = vadd.f32 %v966, %v903
      %v968 = vadd.f32 %v967, %v904
      %v969 = vadd.f32 %v968, %v905
      %v970 = vadd.f32 %v969, %v906
      %v971 = vadd.f32 %v970, %v907
      %v972 = vadd.f32 %v971, %v908
      %v973 = vadd.f32 %v972, %v909
      %v974 = vadd.f32 %v973, %v910
      %v975 = vadd.f32 %v974, %v911
      %v976 = vadd.f32 %v975, %v912
      %v977 = vadd.f32 %v976, %v913
      %v978 = vadd.f32 %v977, %v914
      %v979 = vadd.f32 %v978, %v915
      %v980 = vadd.f32 %v979, %v916
      %v981 = vadd.f32 %v980, %v917
      %v982 = vadd.f32 %v981, %v918
      %v983 = vadd.f32 %v982, %v919
      %v984 = vadd.f32 %v983, %v920
      %v985 = vadd.f32 %v984, %v921
      %v986 = vadd.f32 %v985, %v922
      %v987 = vadd.f32 %v986, %v923
      %v988 = vadd.f32 %v987, %v924
      %v989 = vadd.f32 %v988, %v925
      %v990 = vadd.f32 %v989, %v926
      %v991 = vadd.f32 %v990, %v927
      %v992 = vadd.f32 %v991, %v928
      %v993 = vadd.f32 %v992, %v929
      %v994 = vadd.f32 %v993, %v930
      %v995 = vadd.f32 %v994, %v931
      %v996 = vadd.f32 %v995, %v932
      %v997 = vadd.f32 %v996, %v933
      %v998 = vadd.f32 %v997, %v934
      %v999 = vadd.f32 %v998, %v935
      %v1000 = vadd.f32 %v999, %v936
      %v1001 = vadd.f32 %v1000, %v937
      %v1002 = vadd.f32 %v1001, %v938
      %v1003 = vadd.f32 %v1002, %v939
      %v1004 = vrot.slane %v1003, 4
      %v1005 = vadd.f32 %v1003, %v1004
      %v1006 = vrot.slane %v1005, 2
      %v1007 = vadd.f32 %v1005, %v1006
      %v1008 = vrot.slane %v1007, 1
      %v1009 = vadd.f32 %v1007, %v1008
      %v1010 = vadd.f32 %v940, %v1009
      %1011 = vst [vmem:[%s3] sm:$0x1] %v1010
      %v1012 = vld [vmem:[%s4] sm:$0x1]
      %v1013 = vmul.f32 %v876, %v876
      %v1014 = vmul.f32 %v877, %v877
      %v1015 = vmul.f32 %v878, %v878
      %v1016 = vmul.f32 %v879, %v879
      %v1017 = vmul.f32 %v880, %v880
      %v1018 = vmul.f32 %v881, %v881
      %v1019 = vmul.f32 %v882, %v882
      %v1020 = vmul.f32 %v883, %v883
      %v1021 = vmul.f32 %v884, %v884
      %v1022 = vmul.f32 %v885, %v885
      %v1023 = vmul.f32 %v886, %v886
      %v1024 = vmul.f32 %v887, %v887
      %v1025 = vmul.f32 %v888, %v888
      %v1026 = vmul.f32 %v889, %v889
      %v1027 = vmul.f32 %v890, %v890
      %v1028 = vmul.f32 %v891, %v891
      %v1029 = vmul.f32 %v892, %v892
      %v1030 = vmul.f32 %v893, %v893
      %v1031 = vmul.f32 %v894, %v894
      %v1032 = vmul.f32 %v895, %v895
      %v1033 = vmul.f32 %v896, %v896
      %v1034 = vmul.f32 %v897, %v897
      %v1035 = vmul.f32 %v898, %v898
      %v1036 = vmul.f32 %v899, %v899
      %v1037 = vmul.f32 %v900, %v900
      %v1038 = vmul.f32 %v901, %v901
      %v1039 = vmul.f32 %v902, %v902
      %v1040 = vmul.f32 %v903, %v903
      %v1041 = vmul.f32 %v904, %v904
      %v1042 = vmul.f32 %v905, %v905
      %v1043 = vmul.f32 %v906, %v906
      %v1044 = vmul.f32 %v907, %v907
      %v1045 = vmul.f32 %v908, %v908
      %v1046 = vmul.f32 %v909, %v909
      %v1047 = vmul.f32 %v910, %v910
      %v1048 = vmul.f32 %v911, %v911
      %v1049 = vmul.f32 %v912, %v912
      %v1050 = vmul.f32 %v913, %v913
      %v1051 = vmul.f32 %v914, %v914
      %v1052 = vmul.f32 %v915, %v915
      %v1053 = vmul.f32 %v916, %v916
      %v1054 = vmul.f32 %v917, %v917
      %v1055 = vmul.f32 %v918, %v918
      %v1056 = vmul.f32 %v919, %v919
      %v1057 = vmul.f32 %v920, %v920
      %v1058 = vmul.f32 %v921, %v921
      %v1059 = vmul.f32 %v922, %v922
      %v1060 = vmul.f32 %v923, %v923
      %v1061 = vmul.f32 %v924, %v924
      %v1062 = vmul.f32 %v925, %v925
      %v1063 = vmul.f32 %v926, %v926
      %v1064 = vmul.f32 %v927, %v927
      %v1065 = vmul.f32 %v928, %v928
      %v1066 = vmul.f32 %v929, %v929
      %v1067 = vmul.f32 %v930, %v930
      %v1068 = vmul.f32 %v931, %v931
      %v1069 = vmul.f32 %v932, %v932
      %v1070 = vmul.f32 %v933, %v933
      %v1071 = vmul.f32 %v934, %v934
      %v1072 = vmul.f32 %v935, %v935
      %v1073 = vmul.f32 %v936, %v936
      %v1074 = vmul.f32 %v937, %v937
      %v1075 = vmul.f32 %v938, %v938
      %v1076 = vmul.f32 %v939, %v939
      %v1077 = vadd.f32 %v1013, %v1014
      %v1078 = vadd.f32 %v1077, %v1015
      %v1079 = vadd.f32 %v1078, %v1016
      %v1080 = vadd.f32 %v1079, %v1017
      %v1081 = vadd.f32 %v1080, %v1018
      %v1082 = vadd.f32 %v1081, %v1019
      %v1083 = vadd.f32 %v1082, %v1020
      %v1084 = vadd.f32 %v1083, %v1021
      %v1085 = vadd.f32 %v1084, %v1022
      %v1086 = vadd.f32 %v1085, %v1023
      %v1087 = vadd.f32 %v1086, %v1024
      %v1088 = vadd.f32 %v1087, %v1025
      %v1089 = vadd.f32 %v1088, %v1026
      %v1090 = vadd.f32 %v1089, %v1027
      %v1091 = vadd.f32 %v1090, %v1028
      %v1092 = vadd.f32 %v1091, %v1029
      %v1093 = vadd.f32 %v1092, %v1030
      %v1094 = vadd.f32 %v1093, %v1031
      %v1095 = vadd.f32 %v1094, %v1032
      %v1096 = vadd.f32 %v1095, %v1033
      %v1097 = vadd.f32 %v1096, %v1034
      %v1098 = vadd.f32 %v1097, %v1035
      %v1099 = vadd.f32 %v1098, %v1036
      %v1100 = vadd.f32 %v1099, %v1037
      %v1101 = vadd.f32 %v1100, %v1038
      %v1102 = vadd.f32 %v1101, %v1039
      %v1103 = vadd.f32 %v1102, %v1040
      %v1104 = vadd.f32 %v1103, %v1041
      %v1105 = vadd.f32 %v1104, %v1042
      %v1106 = vadd.f32 %v1105, %v1043
      %v1107 = vadd.f32 %v1106, %v1044
      %v1108 = vadd.f32 %v1107, %v1045
      %v1109 = vadd.f32 %v1108, %v1046
      %v1110 = vadd.f32 %v1109, %v1047
      %v1111 = vadd.f32 %v1110, %v1048
      %v1112 = vadd.f32 %v1111, %v1049
      %v1113 = vadd.f32 %v1112, %v1050
      %v1114 = vadd.f32 %v1113, %v1051
      %v1115 = vadd.f32 %v1114, %v1052
      %v1116 = vadd.f32 %v1115, %v1053
      %v1117 = vadd.f32 %v1116, %v1054
      %v1118 = vadd.f32 %v1117, %v1055
      %v1119 = vadd.f32 %v1118, %v1056
      %v1120 = vadd.f32 %v1119, %v1057
      %v1121 = vadd.f32 %v1120, %v1058
      %v1122 = vadd.f32 %v1121, %v1059
      %v1123 = vadd.f32 %v1122, %v1060
      %v1124 = vadd.f32 %v1123, %v1061
      %v1125 = vadd.f32 %v1124, %v1062
      %v1126 = vadd.f32 %v1125, %v1063
      %v1127 = vadd.f32 %v1126, %v1064
      %v1128 = vadd.f32 %v1127, %v1065
      %v1129 = vadd.f32 %v1128, %v1066
      %v1130 = vadd.f32 %v1129, %v1067
      %v1131 = vadd.f32 %v1130, %v1068
      %v1132 = vadd.f32 %v1131, %v1069
      %v1133 = vadd.f32 %v1132, %v1070
      %v1134 = vadd.f32 %v1133, %v1071
      %v1135 = vadd.f32 %v1134, %v1072
      %v1136 = vadd.f32 %v1135, %v1073
      %v1137 = vadd.f32 %v1136, %v1074
      %v1138 = vadd.f32 %v1137, %v1075
      %v1139 = vadd.f32 %v1138, %v1076
      %v1140 = vrot.slane %v1139, 4
      %v1141 = vadd.f32 %v1139, %v1140
      %v1142 = vrot.slane %v1141, 2
      %v1143 = vadd.f32 %v1141, %v1142
      %v1144 = vrot.slane %v1143, 1
      %v1145 = vadd.f32 %v1143, %v1144
      %v1146 = vadd.f32 %v1012, %v1145
      %1147 = vst [vmem:[%s4] sm:$0x1] %v1146
      %s1148 = smul.u32 64, %s16
      %p1149 = scmp.lt.s32.totalorder %s1148, 255
      %s1150 = scalar_select %p1149, %s1148, 255
      %s1151 = smul.addr %s1150, 8
      %s1152 = scalar_lea.vmem %s2, %s1151
      // Predicated region
      $region33: #{upblock2d_forward.2} parent=27 // pred_check
        %p1153 = pneg %p81
      $region34: #{upblock2d_forward.2} parent=27 // pred_check_branch
        %1155 = sbr.rel (%p1153) target = $region36
      $region35: #{upblock2d_forward.2} parent=27 // pred_region
        %s1156 = smul.u32 64, %s16
      $region36: #{upblock2d_forward.2} parent=27 // pred_fallthru
        _
      // Predicated region
      $region37: #{upblock2d_forward.2} parent=27 // pred_check
        %p1157 = pneg %p102
      $region38: #{upblock2d_forward.2} parent=27 // pred_check_branch
        %1159 = sbr.rel (%p1157) target = $region40
      $region39: #{upblock2d_forward.2} parent=27 // pred_region
        _
      $region40: #{upblock2d_forward.2} parent=27 // pred_fallthru
        _
      // Predicated region
      $region41: #{upblock2d_forward.2} parent=27 // pred_check
        %p1160 = pneg %p123
      $region42: #{upblock2d_forward.2} parent=27 // pred_check_branch
        %1162 = sbr.rel (%p1160) target = $region44
      $region43: #{upblock2d_forward.2} parent=27 // pred_region
        _
      $region44: #{upblock2d_forward.2} parent=27 // pred_fallthru
        _
      // Predicated region
      $region45: #{upblock2d_forward.2} parent=27 // pred_check
        %p1163 = pneg %p102
      $region46: #{upblock2d_forward.2} parent=27 // pred_check_branch
        %1165 = sbr.rel (%p1163) target = $region48
      $region47: #{upblock2d_forward.2} parent=27 // pred_region
        _
      $region48: #{upblock2d_forward.2} parent=27 // pred_fallthru
        _
      // Predicated region
      $region49: #{upblock2d_forward.2} parent=27 // pred_check
        %p1166 = pneg %p123
      $region50: #{upblock2d_forward.2} parent=27 // pred_check_branch
        %1168 = sbr.rel (%p1166) target = $region52
      $region51: #{upblock2d_forward.2} parent=27 // pred_region
        _
      $region52: #{upblock2d_forward.2} parent=27 // pred_fallthru
        _
    $region28: #{upblock2d_forward.2} parent=5 // pred_fallthru
      _
    %p1169 = scmp.le.s32.totalorder 2, %s11
    // Predicated region
    $region53: #{upblock2d_forward.2} parent=5 // pred_check
      %p1170 = pneg %p1169
    $region54: #{upblock2d_forward.2} parent=5 // pred_check_branch
      %1172 = sbr.rel (%p1170) target = $region56
    $region55: #{upblock2d_forward.2} parent=5 // pred_region
      %s1173 = ssub.s32 %s11, 2
      // Predicated region
      $region57: #{upblock2d_forward.2} parent=55 // pred_check
        %p1174 = pneg %p87
      $region58: #{upblock2d_forward.2} parent=55 // pred_check_branch
        %1176 = sbr.rel (%p1174) target = $region60
      $region59: #{upblock2d_forward.2} parent=55 // pred_region
        %s1177 = smul.u32 64, %s17
        %p1178 = scmp.lt.s32.totalorder %s1177, 255
        %s1179 = scalar_select %p1178, %s1177, 255
        %s1180 = smul.addr %s1179, 8
        %s1181 = scalar_lea.vmem %s2, %s1180
      $region60: #{upblock2d_forward.2} parent=55 // pred_fallthru
        _
    $region56: #{upblock2d_forward.2} parent=5 // pred_fallthru
      _
  $region6: #{upblock2d_forward.2} parent=0 // loop_footer
    %s15 = sadd.s32 1, %s11
  $region7: #{upblock2d_forward.2} parent=0 // loop_footer_branch
    %10 = sbr.rel target = $region3
  $region8: #{upblock2d_forward.2} parent=0 // loop_exit
    _

</llo_original>
